<compile_context>
chip_gen: v6e
topology: v6e:2x2x1
jax: 0.10.0
libtpu: 0.0.40
codegen_flags: <defaults>
</compile_context>

<pallas_src>
import functools

import jax
import jax.numpy as jnp
from jax.experimental import pallas as pl
from jax.experimental.pallas import tpu as pltpu


def _layer_norm(x, gamma, beta, eps=1e-5):
    mean = jnp.mean(x, axis=-1, keepdims=True)
    var = jnp.mean((x - mean) ** 2, axis=-1, keepdims=True)
    return (x - mean) * jax.lax.rsqrt(var + eps) * gamma + beta


def transformer_kernel(x_ref, fc1_w_ref, fc1_b_ref,
                       wqkv_ref, bqkv_ref, wo_ref, bo_ref,
                       g1_ref, b1_ref, g2_ref, b2_ref,
                       w1_ref, bw1_ref, w2_ref, bw2_ref,
                       o_ref, h_ref,
                       *, num_heads, seq_len, batch_block, matmul_dtype):
    rows, d = x_ref.shape                  # rows = batch_block * seq_len
    H = num_heads
    hd = d // H
    S = seq_len
    Bt = batch_block
    G = H * Bt                             # merged (head, batch) leading batch dim
    md = matmul_dtype

    layer = pl.program_id(1)
    n_layers = pl.num_programs(1)

    def mm(a, b):
        # Weights arrive pre-transposed (in, out) and pre-cast to `md`; f32 accumulation.
        return jnp.dot(a.astype(md), b.astype(md), preferred_element_type=jnp.float32)

    def to_groups(t):
        # (rows, d) -> (H*Bt, S, hd): per-head lane slices + stack, then leading-dims reshape.
        parts = [t[:, i * hd:(i + 1) * hd] for i in range(H)]
        return jnp.stack(parts, axis=0).reshape(G, S, hd)

    def from_groups(t):
        # (H*Bt, S, hd) -> (rows, d); inverse of to_groups.
        t = t.reshape(H, rows, hd)
        return jnp.concatenate([t[i] for i in range(H)], axis=-1)

    # Initialize the carried activation from the input block at the first layer step.
    @pl.when(layer == 0)
    def _():
        h_ref[...] = x_ref[...]

    h = h_ref[...]                         # (rows, d) f32

    # --- multi-head self-attention (fused QKV matmul, batched-head einsums) ---
    qkv = mm(h, wqkv_ref[0]) + bqkv_ref[0]             # (rows, 3d); q-scale folded into weights
    q = qkv[:, 0 * d:1 * d]
    k = qkv[:, 1 * d:2 * d]
    v = qkv[:, 2 * d:3 * d]
    qg, kg, vg = to_groups(q), to_groups(k), to_groups(v)   # (G, S, hd) f32

    s = jnp.einsum('gqd,gkd->gqk', qg.astype(md), kg.astype(md),
                   preferred_element_type=jnp.float32)        # (G, S, S) f32
    s = s - jnp.max(s, axis=-1, keepdims=True)
    p = jnp.exp(s)
    p = p * pl.reciprocal(jnp.sum(p, axis=-1, keepdims=True), approx=True)
    ctx = jnp.einsum('gqk,gkd->gqd', p.astype(md), vg.astype(md),
                     preferred_element_type=jnp.float32)      # (G, S, hd)

    attn = from_groups(ctx)                                   # (rows, d)
    attn = mm(attn, wo_ref[0]) + bo_ref[0]

    # residual + norm1 (dropout is identity in eval)
    h = _layer_norm(h + attn, g1_ref[0], b1_ref[0])

    # --- feed-forward ---
    ff = jnp.maximum(mm(h, w1_ref[0]) + bw1_ref[0], 0.0)      # relu
    ff = mm(ff, w2_ref[0]) + bw2_ref[0]

    # residual + norm2
    h = _layer_norm(h + ff, g2_ref[0], b2_ref[0])

    # carry to next layer step
    h_ref[...] = h

    # input = self.fc1(x); out = relu(transformer(x) + input) -- only at the last layer step.
    @pl.when(layer == n_layers - 1)
    def _():
        inp = mm(x_ref[...], fc1_w_ref[...]) + fc1_b_ref[...]
        o_ref[...] = jnp.maximum(h + inp, 0.0)


def transformer_forward(x, params, *, num_layers, num_heads,
                        batch_block=None, matmul_dtype=jnp.bfloat16):
    B, S, D = x.shape
    # Default batch_block: prefer >= 2 grid steps (v7x megacore + DMA/compute overlap),
    # subject to B % Bt == 0 and (8, ·)-aligned row blocks.
    if batch_block is None:
        Bt = B
        for cand in range(max(B // 2, 1), 0, -1):
            if B % cand == 0 and (cand * S) % 8 == 0:
                Bt = cand
                break
    else:
        Bt = batch_block
    assert B % Bt == 0, "batch_block must divide batch"
    rows = Bt * S
    assert rows % 8 == 0 or Bt == B, "row-block must be a multiple of 8 (or the full batch)"

    (fc1_w, fc1_b, wqkv, bqkv, wo, bo, g1, b1, g2, b2, w1, bw1, w2, bw2) = params
    hd = D // num_heads
    scale = 1.0 / (hd ** 0.5)

    # Pre-transpose weights OUTSIDE the kernel to contraction-ready (in, out) layout and fold
    # the 1/sqrt(hd) scale into the q columns of wqkv / bqkv.
    wT = lambda w: jnp.swapaxes(w, -1, -2)
    fc1_wt = fc1_w.T
    wqkv_t, wo_t, w1_t, w2_t = wT(wqkv), wT(wo), wT(w1), wT(w2)
    wqkv_t = wqkv_t.at[:, :, :D].multiply(scale)
    bqkv_s = bqkv.at[:, :, :D].multiply(scale)
    if matmul_dtype != jnp.float32:        # bf16 weights halve weight DMA on v6e/v7x
        fc1_wt, wqkv_t, wo_t, w1_t, w2_t = (a.astype(matmul_dtype)
                                            for a in (fc1_wt, wqkv_t, wo_t, w1_t, w2_t))

    x2 = x.reshape(B * S, D)               # fold (batch, seq) into one row axis

    fc1_args = [fc1_wt, fc1_b]
    layer_args = [wqkv_t, bqkv_s, wo_t, bo, g1, b1, g2, b2, w1_t, bw1, w2_t, bw2]

    def full_spec(a):
        nd = a.ndim
        return pl.BlockSpec(a.shape, lambda i, l, _nd=nd: (0,) * _nd)

    def per_layer_spec(a):
        nd = a.ndim
        return pl.BlockSpec((1,) + a.shape[1:], lambda i, l, _nd=nd: (l,) + (0,) * (_nd - 1))

    in_specs = ([pl.BlockSpec((rows, D), lambda i, l: (i, 0))]
                + [full_spec(a) for a in fc1_args]
                + [per_layer_spec(a) for a in layer_args])
    out_spec = pl.BlockSpec((rows, D), lambda i, l: (i, 0))

    def _nbytes(a):
        return int(a.size) * jnp.dtype(a.dtype).itemsize

    # Advisory cost estimate for XLA's scheduler (layer weights re-streamed per batch chunk,
    # fc1 weights counted once).
    Nt = B * S
    Hf = w1.shape[1]
    L = num_layers
    flops = int(L * (2 * Nt * D * 3 * D + 2 * Nt * D * D + 4 * Nt * S * D + 4 * Nt * D * Hf)
                + 2 * Nt * D * D)
    transcendentals = int(L * B * num_heads * S * S)
    layer_bytes = sum(_nbytes(a) for a in layer_args)
    fc1_bytes = sum(_nbytes(a) for a in fc1_args)
    bytes_accessed = int(2 * Nt * D * 4 + (B // Bt) * layer_bytes + fc1_bytes)
    cost = pl.CostEstimate(flops=flops, transcendentals=transcendentals,
                           bytes_accessed=bytes_accessed)

    # Explicit VMEM budget: double-buffered layer-weight + io blocks + resident fc1 + h scratch,
    # with margin; capped at 64 MiB so it is valid on v7x (per-TC physical VMEM).
    layer_block_bytes = sum(_nbytes(a) // a.shape[0] for a in layer_args)
    io_block_bytes = 2 * rows * D * 4
    vmem_needed = 2 * (layer_block_bytes + io_block_bytes + fc1_bytes) + rows * D * 4
    vmem_limit = int(min(max(4 * vmem_needed, 32 * 1024 * 1024), 64 * 1024 * 1024))

    kernel = functools.partial(transformer_kernel,
                               num_heads=num_heads, seq_len=S,
                               batch_block=Bt, matmul_dtype=matmul_dtype)

    out = pl.pallas_call(
        kernel,
        out_shape=jax.ShapeDtypeStruct((B * S, D), jnp.float32),
        grid_spec=pltpu.PrefetchScalarGridSpec(
            num_scalar_prefetch=0,
            grid=(B // Bt, num_layers),       # batch chunks (parallel) x layers (arbitrary)
            in_specs=in_specs,
            out_specs=out_spec,
            scratch_shapes=[pltpu.VMEM((rows, D), jnp.float32)],   # carried activation h
        ),
        compiler_params=pltpu.CompilerParams(
            dimension_semantics=("parallel", "arbitrary"),
            vmem_limit_bytes=vmem_limit),
        cost_estimate=cost,
    )(x2, *fc1_args, *layer_args)
    return out.reshape(B, S, D)


def reference_forward(x, params, *, num_layers, num_heads):
    """Pure-JAX reference (torch-layout params), post-norm encoder, eval mode."""
    (fc1_w, fc1_b, wqkv, bqkv, wo, bo, g1, b1, g2, b2, w1, bw1, w2, bw2) = params
    B, S, D = x.shape
    H = num_heads
    hd = D // H
    inp = x @ fc1_w.T + fc1_b[0]
    h = x
    for l in range(num_layers):
        qkv = h @ wqkv[l].T + bqkv[l, 0]
        q, k, v = qkv[..., :D], qkv[..., D:2 * D], qkv[..., 2 * D:]
        heads = lambda t: t.reshape(B, S, H, hd).transpose(0, 2, 1, 3)
        qh, kh, vh = heads(q), heads(k), heads(v)
        s = jnp.einsum('bhqd,bhkd->bhqk', qh, kh) / (hd ** 0.5)
        p = jax.nn.softmax(s, axis=-1)
        ctx = jnp.einsum('bhqk,bhkd->bhqd', p, vh)
        attn = ctx.transpose(0, 2, 1, 3).reshape(B, S, D)
        attn = attn @ wo[l].T + bo[l, 0]
        h = _layer_norm(h + attn, g1[l, 0], b1[l, 0])
        ff = jnp.maximum(h @ w1[l].T + bw1[l, 0], 0.0)
        ff = ff @ w2[l].T + bw2[l, 0]
        h = _layer_norm(h + ff, g2[l, 0], b2[l, 0])
    return jnp.maximum(h + inp, 0.0)


def init_params(key, input_dim, hidden_dim, num_layers, num_heads, output_dim):
    d = input_dim
    h = hidden_dim
    L = num_layers
    assert num_heads * output_dim == d, "residual add requires num_heads*output_dim == input_dim"
    ks = jax.random.split(key, 16)
    s = 0.05
    fc1_w = s * jax.random.normal(ks[0], (num_heads * output_dim, d), jnp.float32)
    fc1_b = s * jax.random.normal(ks[1], (1, num_heads * output_dim), jnp.float32)
    wqkv = s * jax.random.normal(ks[2], (L, 3 * d, d), jnp.float32)
    bqkv = s * jax.random.normal(ks[3], (L, 1, 3 * d), jnp.float32)
    wo = s * jax.random.normal(ks[4], (L, d, d), jnp.float32)
    bo = s * jax.random.normal(ks[5], (L, 1, d), jnp.float32)
    g1 = jnp.ones((L, 1, d), jnp.float32)
    b1 = jnp.zeros((L, 1, d), jnp.float32)
    g2 = jnp.ones((L, 1, d), jnp.float32)
    b2 = jnp.zeros((L, 1, d), jnp.float32)
    w1 = s * jax.random.normal(ks[6], (L, h, d), jnp.float32)
    bw1 = s * jax.random.normal(ks[7], (L, 1, h), jnp.float32)
    w2 = s * jax.random.normal(ks[8], (L, d, h), jnp.float32)
    bw2 = s * jax.random.normal(ks[9], (L, 1, d), jnp.float32)
    return (fc1_w, fc1_b, wqkv, bqkv, wo, bo, g1, b1, g2, b2, w1, bw1, w2, bw2)


if __name__ == "__main__":
    # num_heads * output_dim must equal input_dim so that `x + input` in forward() is a valid
    # elementwise add, as in the PyTorch code.
    input_dim, hidden_dim, num_layers, num_heads, output_dim = 32, 64, 2, 4, 8
    batch, seq = 2, 8

    key = jax.random.PRNGKey(0)
    kx, kp = jax.random.split(key)
    x = jax.random.normal(kx, (batch, seq, input_dim), jnp.float32)
    params = init_params(kp, input_dim, hidden_dim, num_layers, num_heads, output_dim)

    ref = reference_forward(x, params, num_layers=num_layers, num_heads=num_heads)
    ref = jax.block_until_ready(ref)

    # f32 operand path: near-exact parity with the reference.
    out_f32 = transformer_forward(x, params, num_layers=num_layers, num_heads=num_heads,
                                  matmul_dtype=jnp.float32)
    out_f32 = jax.block_until_ready(out_f32)
    assert out_f32.shape == (batch, seq, input_dim)
    assert bool(jnp.all(jnp.isfinite(out_f32)))
    assert bool(jnp.all(out_f32 >= 0.0))                   # final relu
    err_f32 = float(jnp.max(jnp.abs(out_f32 - ref)))
    assert err_f32 < 2e-2, f"f32 mismatch vs reference: {err_f32}"

    # Default path: bf16 MXU operands, f32 accumulation.
    out_bf16 = transformer_forward(x, params, num_layers=num_layers, num_heads=num_heads)
    out_bf16 = jax.block_until_ready(out_bf16)
    assert out_bf16.shape == (batch, seq, input_dim)
    assert bool(jnp.all(jnp.isfinite(out_bf16)))
    assert bool(jnp.all(out_bf16 >= 0.0))
    err_bf16 = float(jnp.max(jnp.abs(out_bf16 - ref)))
    assert err_bf16 < 6e-2, f"bf16 mismatch vs reference: {err_bf16}"

    print("KERNEL_OK")
</pallas_src>

<mosaic_0001>
module attributes {stable_mosaic.version = 11 : i64} {
  func.func @transformer_kernel(%arg0: i32, %arg1: i32, %arg2: memref<8x32xf32, #tpu.memory_space<vmem>>, %arg3: memref<32x32xf32, #tpu.memory_space<vmem>>, %arg4: memref<1x32xf32, #tpu.memory_space<vmem>>, %arg5: memref<1x32x96xf32, #tpu.memory_space<vmem>>, %arg6: memref<1x1x96xf32, #tpu.memory_space<vmem>>, %arg7: memref<1x32x32xf32, #tpu.memory_space<vmem>>, %arg8: memref<1x1x32xf32, #tpu.memory_space<vmem>>, %arg9: memref<1x1x32xf32, #tpu.memory_space<vmem>>, %arg10: memref<1x1x32xf32, #tpu.memory_space<vmem>>, %arg11: memref<1x1x32xf32, #tpu.memory_space<vmem>>, %arg12: memref<1x1x32xf32, #tpu.memory_space<vmem>>, %arg13: memref<1x32x64xf32, #tpu.memory_space<vmem>>, %arg14: memref<1x1x64xf32, #tpu.memory_space<vmem>>, %arg15: memref<1x64x32xf32, #tpu.memory_space<vmem>>, %arg16: memref<1x1x32xf32, #tpu.memory_space<vmem>>, %arg17: memref<8x32xf32, #tpu.memory_space<vmem>>, %arg18: memref<8x32xf32, #tpu.memory_space<vmem>>) attributes {dimension_semantics = [#tpu.dimension_semantics<parallel>, #tpu.dimension_semantics<arbitrary>], iteration_bounds = array<i64: 2, 2>, scalar_prefetch = 0 : i64, scratch_operands = 1 : i64, tpu.core_type = #tpu.core_type<tc>, window_params = [{transform_indices = @transform_0, window_bounds = array<i64: 8, 32>}, {pipeline_mode = #tpu.pipeline_mode<synchronous>, transform_indices = @transform_1, window_bounds = array<i64: 32, 32>}, {pipeline_mode = #tpu.pipeline_mode<synchronous>, transform_indices = @transform_2, window_bounds = array<i64: 1, 32>}, {transform_indices = @transform_3, window_bounds = array<i64: 1, 32, 96>}, {transform_indices = @transform_4, window_bounds = array<i64: 1, 1, 96>}, {transform_indices = @transform_5, window_bounds = array<i64: 1, 32, 32>}, {transform_indices = @transform_6, window_bounds = array<i64: 1, 1, 32>}, {transform_indices = @transform_7, window_bounds = array<i64: 1, 1, 32>}, {transform_indices = @transform_8, window_bounds = array<i64: 1, 1, 32>}, {transform_indices = @transform_9, window_bounds = array<i64: 1, 1, 32>}, {transform_indices = @transform_10, window_bounds = array<i64: 1, 1, 32>}, {transform_indices = @transform_11, window_bounds = array<i64: 1, 32, 64>}, {transform_indices = @transform_12, window_bounds = array<i64: 1, 1, 64>}, {transform_indices = @transform_13, window_bounds = array<i64: 1, 64, 32>}, {transform_indices = @transform_14, window_bounds = array<i64: 1, 1, 32>}, {transform_indices = @transform_15, window_bounds = array<i64: 8, 32>}]} {
    %c0_i32 = arith.constant 0 : i32
    %0 = arith.cmpi eq, %arg1, %c0_i32 : i32
    %1 = arith.extui %0 : i1 to i32
    %c0_i32_0 = arith.constant 0 : i32
    %2 = arith.cmpi ne, %1, %c0_i32_0 : i32
    scf.if %2 {
      %c0_59 = arith.constant 0 : index
      %c0_60 = arith.constant 0 : index
      %143 = vector.load %arg2[%c0_59, %c0_60] : memref<8x32xf32, #tpu.memory_space<vmem>>, vector<8x32xf32>
      %c0_61 = arith.constant 0 : index
      %c0_62 = arith.constant 0 : index
      %144 = vector.load %arg18[%c0_61, %c0_62] : memref<8x32xf32, #tpu.memory_space<vmem>>, vector<8x32xf32>
      tpu.vector_store %arg18[%c0_61, %c0_62], %143 {strides = array<i32>} : memref<8x32xf32, #tpu.memory_space<vmem>>, vector<8x32xf32>,
    } else {
    }
    %c0 = arith.constant 0 : index
    %c0_1 = arith.constant 0 : index
    %3 = vector.load %arg18[%c0, %c0_1] : memref<8x32xf32, #tpu.memory_space<vmem>>, vector<8x32xf32>
    %c0_2 = arith.constant 0 : index
    %c0_3 = arith.constant 0 : index
    %c0_4 = arith.constant 0 : index
    %4 = vector.load %arg5[%c0_2, %c0_3, %c0_4] : memref<1x32x96xf32, #tpu.memory_space<vmem>>, vector<1x32x96xf32>
    %5 = vector.shape_cast %4 : vector<1x32x96xf32> to vector<32x96xf32>
    %cst = arith.constant dense<0.000000e+00> : vector<8x96xf32>
    %6 = tpu.matmul %3, %5, %cst {dimension_numbers = #tpu.dot_dimension_numbers<[1], [0], [0], [1], [0, 0, 1, 1], [], []>} : vector<8x32xf32>, vector<32x96xf32>, vector<8x96xf32> -> vector<8x96xf32>
    %c0_5 = arith.constant 0 : index
    %c0_6 = arith.constant 0 : index
    %c0_7 = arith.constant 0 : index
    %7 = vector.load %arg6[%c0_5, %c0_6, %c0_7] : memref<1x1x96xf32, #tpu.memory_space<vmem>>, vector<1x1x96xf32>
    %8 = vector.shape_cast %7 : vector<1x1x96xf32> to vector<1x96xf32>
    %9 = vector.broadcast %8 : vector<1x96xf32> to vector<8x96xf32>
    %10 = arith.addf %6, %9 : vector<8x96xf32>
    %11 = vector.extract_strided_slice %10 {offsets = [0, 0], sizes = [8, 32], strides = [1, 1]} : vector<8x96xf32> to vector<8x32xf32>
    %12 = vector.extract_strided_slice %10 {offsets = [0, 32], sizes = [8, 32], strides = [1, 1]} : vector<8x96xf32> to vector<8x32xf32>
    %13 = vector.extract_strided_slice %10 {offsets = [0, 64], sizes = [8, 32], strides = [1, 1]} : vector<8x96xf32> to vector<8x32xf32>
    %14 = vector.extract_strided_slice %11 {offsets = [0, 0], sizes = [8, 8], strides = [1, 1]} : vector<8x32xf32> to vector<8x8xf32>
    %15 = vector.extract_strided_slice %11 {offsets = [0, 8], sizes = [8, 8], strides = [1, 1]} : vector<8x32xf32> to vector<8x8xf32>
    %16 = vector.extract_strided_slice %11 {offsets = [0, 16], sizes = [8, 8], strides = [1, 1]} : vector<8x32xf32> to vector<8x8xf32>
    %17 = vector.extract_strided_slice %11 {offsets = [0, 24], sizes = [8, 8], strides = [1, 1]} : vector<8x32xf32> to vector<8x8xf32>
    %18 = vector.shape_cast %14 : vector<8x8xf32> to vector<1x8x8xf32>
    %19 = vector.shape_cast %15 : vector<8x8xf32> to vector<1x8x8xf32>
    %20 = vector.shape_cast %16 : vector<8x8xf32> to vector<1x8x8xf32>
    %21 = vector.shape_cast %17 : vector<8x8xf32> to vector<1x8x8xf32>
    %22 = tpu.concatenate %18, %19, %20, %21 in 0 : vector<1x8x8xf32>, vector<1x8x8xf32>, vector<1x8x8xf32>, vector<1x8x8xf32> -> vector<4x8x8xf32>
    %23 = vector.extract_strided_slice %12 {offsets = [0, 0], sizes = [8, 8], strides = [1, 1]} : vector<8x32xf32> to vector<8x8xf32>
    %24 = vector.extract_strided_slice %12 {offsets = [0, 8], sizes = [8, 8], strides = [1, 1]} : vector<8x32xf32> to vector<8x8xf32>
    %25 = vector.extract_strided_slice %12 {offsets = [0, 16], sizes = [8, 8], strides = [1, 1]} : vector<8x32xf32> to vector<8x8xf32>
    %26 = vector.extract_strided_slice %12 {offsets = [0, 24], sizes = [8, 8], strides = [1, 1]} : vector<8x32xf32> to vector<8x8xf32>
    %27 = vector.shape_cast %23 : vector<8x8xf32> to vector<1x8x8xf32>
    %28 = vector.shape_cast %24 : vector<8x8xf32> to vector<1x8x8xf32>
    %29 = vector.shape_cast %25 : vector<8x8xf32> to vector<1x8x8xf32>
    %30 = vector.shape_cast %26 : vector<8x8xf32> to vector<1x8x8xf32>
    %31 = tpu.concatenate %27, %28, %29, %30 in 0 : vector<1x8x8xf32>, vector<1x8x8xf32>, vector<1x8x8xf32>, vector<1x8x8xf32> -> vector<4x8x8xf32>
    %32 = vector.extract_strided_slice %13 {offsets = [0, 0], sizes = [8, 8], strides = [1, 1]} : vector<8x32xf32> to vector<8x8xf32>
    %33 = vector.extract_strided_slice %13 {offsets = [0, 8], sizes = [8, 8], strides = [1, 1]} : vector<8x32xf32> to vector<8x8xf32>
    %34 = vector.extract_strided_slice %13 {offsets = [0, 16], sizes = [8, 8], strides = [1, 1]} : vector<8x32xf32> to vector<8x8xf32>
    %35 = vector.extract_strided_slice %13 {offsets = [0, 24], sizes = [8, 8], strides = [1, 1]} : vector<8x32xf32> to vector<8x8xf32>
    %36 = vector.shape_cast %32 : vector<8x8xf32> to vector<1x8x8xf32>
    %37 = vector.shape_cast %33 : vector<8x8xf32> to vector<1x8x8xf32>
    %38 = vector.shape_cast %34 : vector<8x8xf32> to vector<1x8x8xf32>
    %39 = vector.shape_cast %35 : vector<8x8xf32> to vector<1x8x8xf32>
    %40 = tpu.concatenate %36, %37, %38, %39 in 0 : vector<1x8x8xf32>, vector<1x8x8xf32>, vector<1x8x8xf32>, vector<1x8x8xf32> -> vector<4x8x8xf32>
    "tpu.trace_start"() <{level = 10 : i32, message = "gqd,gkd->gqk"}> : () -> ()
    %cst_8 = arith.constant dense<0.000000e+00> : vector<4x8x8xf32>
    %41 = tpu.matmul %22, %31, %cst_8 {dimension_numbers = #tpu.dot_dimension_numbers<[2], [2], [1], [1], [0, 0, 0, 1, 1, 1], [0], [0]>} : vector<4x8x8xf32>, vector<4x8x8xf32>, vector<4x8x8xf32> -> vector<4x8x8xf32>
    "tpu.trace_stop"() : () -> ()
    %cst_9 = arith.constant dense<0xFF800000> : vector<4x8xf32>
    %42 = vector.multi_reduction <maximumf>, %41, %cst_9 [2] : vector<4x8x8xf32> to vector<4x8xf32>
    %43 = vector.shape_cast %42 : vector<4x8xf32> to vector<4x8x1xf32>
    %44 = vector.broadcast %43 : vector<4x8x1xf32> to vector<4x8x8xf32>
    %45 = arith.subf %41, %44 : vector<4x8x8xf32>
    %46 = math.exp %45 : vector<4x8x8xf32>
    %cst_10 = arith.constant dense<0.000000e+00> : vector<4x8xf32>
    %47 = vector.multi_reduction <add>, %46, %cst_10 [2] : vector<4x8x8xf32> to vector<4x8xf32>
    %48 = vector.shape_cast %47 : vector<4x8xf32> to vector<4x8x1xf32>
    %49 = tpu.reciprocal %48 {approx = true} : vector<4x8x1xf32> -> vector<4x8x1xf32>
    %50 = vector.broadcast %49 : vector<4x8x1xf32> to vector<4x8x8xf32>
    %51 = arith.mulf %46, %50 : vector<4x8x8xf32>
    "tpu.trace_start"() <{level = 10 : i32, message = "gqk,gkd->gqd"}> : () -> ()
    %cst_11 = arith.constant dense<0.000000e+00> : vector<4x8x8xf32>
    %52 = tpu.matmul %51, %40, %cst_11 {dimension_numbers = #tpu.dot_dimension_numbers<[2], [1], [1], [2], [0, 0, 0, 1, 1, 2], [0], [0]>} : vector<4x8x8xf32>, vector<4x8x8xf32>, vector<4x8x8xf32> -> vector<4x8x8xf32>
    "tpu.trace_stop"() : () -> ()
    %53 = vector.extract_strided_slice %52 {offsets = [0, 0, 0], sizes = [1, 8, 8], strides = [1, 1, 1]} : vector<4x8x8xf32> to vector<1x8x8xf32>
    %54 = vector.shape_cast %53 : vector<1x8x8xf32> to vector<8x8xf32>
    %55 = vector.extract_strided_slice %52 {offsets = [1, 0, 0], sizes = [1, 8, 8], strides = [1, 1, 1]} : vector<4x8x8xf32> to vector<1x8x8xf32>
    %56 = vector.shape_cast %55 : vector<1x8x8xf32> to vector<8x8xf32>
    %57 = vector.extract_strided_slice %52 {offsets = [2, 0, 0], sizes = [1, 8, 8], strides = [1, 1, 1]} : vector<4x8x8xf32> to vector<1x8x8xf32>
    %58 = vector.shape_cast %57 : vector<1x8x8xf32> to vector<8x8xf32>
    %59 = vector.extract_strided_slice %52 {offsets = [3, 0, 0], sizes = [1, 8, 8], strides = [1, 1, 1]} : vector<4x8x8xf32> to vector<1x8x8xf32>
    %60 = vector.shape_cast %59 : vector<1x8x8xf32> to vector<8x8xf32>
    %61 = tpu.concatenate %54, %56, %58, %60 in 1 : vector<8x8xf32>, vector<8x8xf32>, vector<8x8xf32>, vector<8x8xf32> -> vector<8x32xf32>
    %c0_12 = arith.constant 0 : index
    %c0_13 = arith.constant 0 : index
    %c0_14 = arith.constant 0 : index
    %62 = vector.load %arg7[%c0_12, %c0_13, %c0_14] : memref<1x32x32xf32, #tpu.memory_space<vmem>>, vector<1x32x32xf32>
    %63 = vector.shape_cast %62 : vector<1x32x32xf32> to vector<32x32xf32>
    %cst_15 = arith.constant dense<0.000000e+00> : vector<8x32xf32>
    %64 = tpu.matmul %61, %63, %cst_15 {dimension_numbers = #tpu.dot_dimension_numbers<[1], [0], [0], [1], [0, 0, 1, 1], [], []>} : vector<8x32xf32>, vector<32x32xf32>, vector<8x32xf32> -> vector<8x32xf32>
    %c0_16 = arith.constant 0 : index
    %c0_17 = arith.constant 0 : index
    %c0_18 = arith.constant 0 : index
    %65 = vector.load %arg8[%c0_16, %c0_17, %c0_18] : memref<1x1x32xf32, #tpu.memory_space<vmem>>, vector<1x1x32xf32>
    %66 = vector.shape_cast %65 : vector<1x1x32xf32> to vector<1x32xf32>
    %67 = vector.broadcast %66 : vector<1x32xf32> to vector<8x32xf32>
    %68 = arith.addf %64, %67 : vector<8x32xf32>
    %69 = arith.addf %3, %68 : vector<8x32xf32>
    %c0_19 = arith.constant 0 : index
    %c0_20 = arith.constant 0 : index
    %c0_21 = arith.constant 0 : index
    %70 = vector.load %arg9[%c0_19, %c0_20, %c0_21] : memref<1x1x32xf32, #tpu.memory_space<vmem>>, vector<1x1x32xf32>
    %71 = vector.shape_cast %70 : vector<1x1x32xf32> to vector<1x32xf32>
    %c0_22 = arith.constant 0 : index
    %c0_23 = arith.constant 0 : index
    %c0_24 = arith.constant 0 : index
    %72 = vector.load %arg10[%c0_22, %c0_23, %c0_24] : memref<1x1x32xf32, #tpu.memory_space<vmem>>, vector<1x1x32xf32>
    %73 = vector.shape_cast %72 : vector<1x1x32xf32> to vector<1x32xf32>
    %cst_25 = arith.constant dense<0.000000e+00> : vector<8xf32>
    %74 = vector.multi_reduction <add>, %69, %cst_25 [1] : vector<8x32xf32> to vector<8xf32>
    %75 = vector.shape_cast %74 : vector<8xf32> to vector<8x1xf32>
    %cst_26 = arith.constant 3.200000e+01 : f32
    %76 = vector.broadcast %cst_26 : f32 to vector<8x1xf32>
    %77 = arith.divf %75, %76 : vector<8x1xf32>
    %78 = vector.broadcast %77 : vector<8x1xf32> to vector<8x32xf32>
    %79 = arith.subf %69, %78 : vector<8x32xf32>
    %80 = arith.mulf %79, %79 : vector<8x32xf32>
    %cst_27 = arith.constant dense<0.000000e+00> : vector<8xf32>
    %81 = vector.multi_reduction <add>, %80, %cst_27 [1] : vector<8x32xf32> to vector<8xf32>
    %82 = vector.shape_cast %81 : vector<8xf32> to vector<8x1xf32>
    %cst_28 = arith.constant 3.200000e+01 : f32
    %83 = vector.broadcast %cst_28 : f32 to vector<8x1xf32>
    %84 = arith.divf %82, %83 : vector<8x1xf32>
    %85 = vector.broadcast %77 : vector<8x1xf32> to vector<8x32xf32>
    %86 = arith.subf %69, %85 : vector<8x32xf32>
    %cst_29 = arith.constant 9.99999974E-6 : f32
    %87 = vector.broadcast %cst_29 : f32 to vector<8x1xf32>
    %88 = arith.addf %84, %87 : vector<8x1xf32>
    %89 = math.rsqrt %88 : vector<8x1xf32>
    %90 = vector.broadcast %89 : vector<8x1xf32> to vector<8x32xf32>
    %91 = arith.mulf %86, %90 : vector<8x32xf32>
    %92 = vector.broadcast %71 : vector<1x32xf32> to vector<8x32xf32>
    %93 = arith.mulf %91, %92 : vector<8x32xf32>
    %94 = vector.broadcast %73 : vector<1x32xf32> to vector<8x32xf32>
    %95 = arith.addf %93, %94 : vector<8x32xf32>
    %c0_30 = arith.constant 0 : index
    %c0_31 = arith.constant 0 : index
    %c0_32 = arith.constant 0 : index
    %96 = vector.load %arg13[%c0_30, %c0_31, %c0_32] : memref<1x32x64xf32, #tpu.memory_space<vmem>>, vector<1x32x64xf32>
    %97 = vector.shape_cast %96 : vector<1x32x64xf32> to vector<32x64xf32>
    %cst_33 = arith.constant dense<0.000000e+00> : vector<8x64xf32>
    %98 = tpu.matmul %95, %97, %cst_33 {dimension_numbers = #tpu.dot_dimension_numbers<[1], [0], [0], [1], [0, 0, 1, 1], [], []>} : vector<8x32xf32>, vector<32x64xf32>, vector<8x64xf32> -> vector<8x64xf32>
    %c0_34 = arith.constant 0 : index
    %c0_35 = arith.constant 0 : index
    %c0_36 = arith.constant 0 : index
    %99 = vector.load %arg14[%c0_34, %c0_35, %c0_36] : memref<1x1x64xf32, #tpu.memory_space<vmem>>, vector<1x1x64xf32>
    %100 = vector.shape_cast %99 : vector<1x1x64xf32> to vector<1x64xf32>
    %101 = vector.broadcast %100 : vector<1x64xf32> to vector<8x64xf32>
    %102 = arith.addf %98, %101 : vector<8x64xf32>
    %cst_37 = arith.constant 0.000000e+00 : f32
    %103 = vector.broadcast %cst_37 : f32 to vector<8x64xf32>
    %104 = arith.maximumf %102, %103 : vector<8x64xf32>
    %c0_38 = arith.constant 0 : index
    %c0_39 = arith.constant 0 : index
    %c0_40 = arith.constant 0 : index
    %105 = vector.load %arg15[%c0_38, %c0_39, %c0_40] : memref<1x64x32xf32, #tpu.memory_space<vmem>>, vector<1x64x32xf32>
    %106 = vector.shape_cast %105 : vector<1x64x32xf32> to vector<64x32xf32>
    %cst_41 = arith.constant dense<0.000000e+00> : vector<8x32xf32>
    %107 = tpu.matmul %104, %106, %cst_41 {dimension_numbers = #tpu.dot_dimension_numbers<[1], [0], [0], [1], [0, 0, 1, 1], [], []>} : vector<8x64xf32>, vector<64x32xf32>, vector<8x32xf32> -> vector<8x32xf32>
    %c0_42 = arith.constant 0 : index
    %c0_43 = arith.constant 0 : index
    %c0_44 = arith.constant 0 : index
    %108 = vector.load %arg16[%c0_42, %c0_43, %c0_44] : memref<1x1x32xf32, #tpu.memory_space<vmem>>, vector<1x1x32xf32>
    %109 = vector.shape_cast %108 : vector<1x1x32xf32> to vector<1x32xf32>
    %110 = vector.broadcast %109 : vector<1x32xf32> to vector<8x32xf32>
    %111 = arith.addf %107, %110 : vector<8x32xf32>
    %112 = arith.addf %95, %111 : vector<8x32xf32>
    %c0_45 = arith.constant 0 : index
    %c0_46 = arith.constant 0 : index
    %c0_47 = arith.constant 0 : index
    %113 = vector.load %arg11[%c0_45, %c0_46, %c0_47] : memref<1x1x32xf32, #tpu.memory_space<vmem>>, vector<1x1x32xf32>
    %114 = vector.shape_cast %113 : vector<1x1x32xf32> to vector<1x32xf32>
    %c0_48 = arith.constant 0 : index
    %c0_49 = arith.constant 0 : index
    %c0_50 = arith.constant 0 : index
    %115 = vector.load %arg12[%c0_48, %c0_49, %c0_50] : memref<1x1x32xf32, #tpu.memory_space<vmem>>, vector<1x1x32xf32>
    %116 = vector.shape_cast %115 : vector<1x1x32xf32> to vector<1x32xf32>
    %cst_51 = arith.constant dense<0.000000e+00> : vector<8xf32>
    %117 = vector.multi_reduction <add>, %112, %cst_51 [1] : vector<8x32xf32> to vector<8xf32>
    %118 = vector.shape_cast %117 : vector<8xf32> to vector<8x1xf32>
    %cst_52 = arith.constant 3.200000e+01 : f32
    %119 = vector.broadcast %cst_52 : f32 to vector<8x1xf32>
    %120 = arith.divf %118, %119 : vector<8x1xf32>
    %121 = vector.broadcast %120 : vector<8x1xf32> to vector<8x32xf32>
    %122 = arith.subf %112, %121 : vector<8x32xf32>
    %123 = arith.mulf %122, %122 : vector<8x32xf32>
    %cst_53 = arith.constant dense<0.000000e+00> : vector<8xf32>
    %124 = vector.multi_reduction <add>, %123, %cst_53 [1] : vector<8x32xf32> to vector<8xf32>
    %125 = vector.shape_cast %124 : vector<8xf32> to vector<8x1xf32>
    %cst_54 = arith.constant 3.200000e+01 : f32
    %126 = vector.broadcast %cst_54 : f32 to vector<8x1xf32>
    %127 = arith.divf %125, %126 : vector<8x1xf32>
    %128 = vector.broadcast %120 : vector<8x1xf32> to vector<8x32xf32>
    %129 = arith.subf %112, %128 : vector<8x32xf32>
    %cst_55 = arith.constant 9.99999974E-6 : f32
    %130 = vector.broadcast %cst_55 : f32 to vector<8x1xf32>
    %131 = arith.addf %127, %130 : vector<8x1xf32>
    %132 = math.rsqrt %131 : vector<8x1xf32>
    %133 = vector.broadcast %132 : vector<8x1xf32> to vector<8x32xf32>
    %134 = arith.mulf %129, %133 : vector<8x32xf32>
    %135 = vector.broadcast %114 : vector<1x32xf32> to vector<8x32xf32>
    %136 = arith.mulf %134, %135 : vector<8x32xf32>
    %137 = vector.broadcast %116 : vector<1x32xf32> to vector<8x32xf32>
    %138 = arith.addf %136, %137 : vector<8x32xf32>
    %c0_56 = arith.constant 0 : index
    %c0_57 = arith.constant 0 : index
    %139 = vector.load %arg18[%c0_56, %c0_57] : memref<8x32xf32, #tpu.memory_space<vmem>>, vector<8x32xf32>
    tpu.vector_store %arg18[%c0_56, %c0_57], %138 {strides = array<i32>} : memref<8x32xf32, #tpu.memory_space<vmem>>, vector<8x32xf32>,
    %c1_i32 = arith.constant 1 : i32
    %140 = arith.cmpi eq, %arg1, %c1_i32 : i32
    %141 = arith.extui %140 : i1 to i32
    %c0_i32_58 = arith.constant 0 : i32
    %142 = arith.cmpi ne, %141, %c0_i32_58 : i32
    scf.if %142 {
      %c0_59 = arith.constant 0 : index
      %c0_60 = arith.constant 0 : index
      %143 = vector.load %arg2[%c0_59, %c0_60] : memref<8x32xf32, #tpu.memory_space<vmem>>, vector<8x32xf32>
      %c0_61 = arith.constant 0 : index
      %c0_62 = arith.constant 0 : index
      %144 = vector.load %arg3[%c0_61, %c0_62] : memref<32x32xf32, #tpu.memory_space<vmem>>, vector<32x32xf32>
      %cst_63 = arith.constant dense<0.000000e+00> : vector<8x32xf32>
      %145 = tpu.matmul %143, %144, %cst_63 {dimension_numbers = #tpu.dot_dimension_numbers<[1], [0], [0], [1], [0, 0, 1, 1], [], []>} : vector<8x32xf32>, vector<32x32xf32>, vector<8x32xf32> -> vector<8x32xf32>
      %c0_64 = arith.constant 0 : index
      %c0_65 = arith.constant 0 : index
      %146 = vector.load %arg4[%c0_64, %c0_65] : memref<1x32xf32, #tpu.memory_space<vmem>>, vector<1x32xf32>
      %147 = vector.broadcast %146 : vector<1x32xf32> to vector<8x32xf32>
      %148 = arith.addf %145, %147 : vector<8x32xf32>
      %149 = arith.addf %138, %148 : vector<8x32xf32>
      %cst_66 = arith.constant 0.000000e+00 : f32
      %150 = vector.broadcast %cst_66 : f32 to vector<8x32xf32>
      %151 = arith.maximumf %149, %150 : vector<8x32xf32>
      %c0_67 = arith.constant 0 : index
      %c0_68 = arith.constant 0 : index
      %152 = vector.load %arg17[%c0_67, %c0_68] : memref<8x32xf32, #tpu.memory_space<vmem>>, vector<8x32xf32>
      tpu.vector_store %arg17[%c0_67, %c0_68], %151 {strides = array<i32>} : memref<8x32xf32, #tpu.memory_space<vmem>>, vector<8x32xf32>,
    } else {
    }
    return
  }
  func.func @transform_0(%arg0: i32, %arg1: i32) -> (i32, i32) {
    %c0_i32 = arith.constant 0 : i32
    %c0_i32_0 = arith.constant 0 : i32
    return %arg0, %c0_i32 : i32, i32
  }
  func.func @transform_1(%arg0: i32, %arg1: i32) -> (i32, i32) {
    %c0_i32 = arith.constant 0 : i32
    %c0_i32_0 = arith.constant 0 : i32
    %c0_i32_1 = arith.constant 0 : i32
    return %c0_i32, %c0_i32_0 : i32, i32
  }
  func.func @transform_2(%arg0: i32, %arg1: i32) -> (i32, i32) {
    %c0_i32 = arith.constant 0 : i32
    %c0_i32_0 = arith.constant 0 : i32
    %c0_i32_1 = arith.constant 0 : i32
    return %c0_i32, %c0_i32_0 : i32, i32
  }
  func.func @transform_3(%arg0: i32, %arg1: i32) -> (i32, i32, i32) {
    %c0_i32 = arith.constant 0 : i32
    %c0_i32_0 = arith.constant 0 : i32
    %c0_i32_1 = arith.constant 0 : i32
    return %arg1, %c0_i32, %c0_i32_0 : i32, i32, i32
  }
  func.func @transform_4(%arg0: i32, %arg1: i32) -> (i32, i32, i32) {
    %c0_i32 = arith.constant 0 : i32
    %c0_i32_0 = arith.constant 0 : i32
    %c0_i32_1 = arith.constant 0 : i32
    return %arg1, %c0_i32, %c0_i32_0 : i32, i32, i32
  }
  func.func @transform_5(%arg0: i32, %arg1: i32) -> (i32, i32, i32) {
    %c0_i32 = arith.constant 0 : i32
    %c0_i32_0 = arith.constant 0 : i32
    %c0_i32_1 = arith.constant 0 : i32
    return %arg1, %c0_i32, %c0_i32_0 : i32, i32, i32
  }
  func.func @transform_6(%arg0: i32, %arg1: i32) -> (i32, i32, i32) {
    %c0_i32 = arith.constant 0 : i32
    %c0_i32_0 = arith.constant 0 : i32
    %c0_i32_1 = arith.constant 0 : i32
    return %arg1, %c0_i32, %c0_i32_0 : i32, i32, i32
  }
  func.func @transform_7(%arg0: i32, %arg1: i32) -> (i32, i32, i32) {
    %c0_i32 = arith.constant 0 : i32
    %c0_i32_0 = arith.constant 0 : i32
    %c0_i32_1 = arith.constant 0 : i32
    return %arg1, %c0_i32, %c0_i32_0 : i32, i32, i32
  }
  func.func @transform_8(%arg0: i32, %arg1: i32) -> (i32, i32, i32) {
    %c0_i32 = arith.constant 0 : i32
    %c0_i32_0 = arith.constant 0 : i32
    %c0_i32_1 = arith.constant 0 : i32
    return %arg1, %c0_i32, %c0_i32_0 : i32, i32, i32
  }
  func.func @transform_9(%arg0: i32, %arg1: i32) -> (i32, i32, i32) {
    %c0_i32 = arith.constant 0 : i32
    %c0_i32_0 = arith.constant 0 : i32
    %c0_i32_1 = arith.constant 0 : i32
    return %arg1, %c0_i32, %c0_i32_0 : i32, i32, i32
  }
  func.func @transform_10(%arg0: i32, %arg1: i32) -> (i32, i32, i32) {
    %c0_i32 = arith.constant 0 : i32
    %c0_i32_0 = arith.constant 0 : i32
    %c0_i32_1 = arith.constant 0 : i32
    return %arg1, %c0_i32, %c0_i32_0 : i32, i32, i32
  }
  func.func @transform_11(%arg0: i32, %arg1: i32) -> (i32, i32, i32) {
    %c0_i32 = arith.constant 0 : i32
    %c0_i32_0 = arith.constant 0 : i32
    %c0_i32_1 = arith.constant 0 : i32
    return %arg1, %c0_i32, %c0_i32_0 : i32, i32, i32
  }
  func.func @transform_12(%arg0: i32, %arg1: i32) -> (i32, i32, i32) {
    %c0_i32 = arith.constant 0 : i32
    %c0_i32_0 = arith.constant 0 : i32
    %c0_i32_1 = arith.constant 0 : i32
    return %arg1, %c0_i32, %c0_i32_0 : i32, i32, i32
  }
  func.func @transform_13(%arg0: i32, %arg1: i32) -> (i32, i32, i32) {
    %c0_i32 = arith.constant 0 : i32
    %c0_i32_0 = arith.constant 0 : i32
    %c0_i32_1 = arith.constant 0 : i32
    return %arg1, %c0_i32, %c0_i32_0 : i32, i32, i32
  }
  func.func @transform_14(%arg0: i32, %arg1: i32) -> (i32, i32, i32) {
    %c0_i32 = arith.constant 0 : i32
    %c0_i32_0 = arith.constant 0 : i32
    %c0_i32_1 = arith.constant 0 : i32
    return %arg1, %c0_i32, %c0_i32_0 : i32, i32, i32
  }
  func.func @transform_15(%arg0: i32, %arg1: i32) -> (i32, i32) {
    %c0_i32 = arith.constant 0 : i32
    %c0_i32_0 = arith.constant 0 : i32
    return %arg0, %c0_i32 : i32, i32
  }
}

</mosaic_0001>

<llo_original>
// kernel: tpu_custom_call.1
$region0: #{tpu_custom_call.1}
  #allocation0 [shape = 'u32[]', space=smem, size = 0x4, offset = 0x4, fixed_abs, tag = 'smem constant byte address 0x4 - core index']
  #allocation1 [shape = 'u32[144,128]{1,0:T(1,128)}', space=vmem, size = 0x12000, scoped, tag = 'internal scratch']
  #allocation2 [shape = 'f32[8,32]{1,0:T(8,128)}', space=vmem, size = 0x1000, scoped, tag = 'scratch operand']
  %s0 = inlined_call_operand.hbm [shape: f32[16,32], index: 0, kind: input, shape index: {}]
  %s1 = inlined_call_operand.hbm [shape: f32[32,32], index: 1, kind: input, shape index: {}]
  %s2 = inlined_call_operand.hbm [shape: f32[1,32], index: 2, kind: input, shape index: {}]
  %s3 = inlined_call_operand.vmem [shape: f32[2,32,96], index: 3, kind: input, shape index: {}]
  %s4 = inlined_call_operand.vmem [shape: f32[2,1,96], index: 4, kind: input, shape index: {}]
  %s5 = inlined_call_operand.vmem [shape: f32[2,32,32], index: 5, kind: input, shape index: {}]
  %s6 = inlined_call_operand.vmem [shape: f32[2,1,32], index: 6, kind: input, shape index: {}]
  %s7 = inlined_call_operand.vmem [shape: f32[2,1,32], index: 7, kind: input, shape index: {}]
  %s8 = inlined_call_operand.vmem [shape: f32[2,1,32], index: 8, kind: input, shape index: {}]
  %s9 = inlined_call_operand.vmem [shape: f32[2,1,32], index: 9, kind: input, shape index: {}]
  %s10 = inlined_call_operand.vmem [shape: f32[2,1,32], index: 10, kind: input, shape index: {}]
  %s11 = inlined_call_operand.vmem [shape: f32[2,32,64], index: 11, kind: input, shape index: {}]
  %s12 = inlined_call_operand.vmem [shape: f32[2,1,64], index: 12, kind: input, shape index: {}]
  %s13 = inlined_call_operand.vmem [shape: f32[2,64,32], index: 13, kind: input, shape index: {}]
  %s14 = inlined_call_operand.vmem [shape: f32[2,1,32], index: 14, kind: input, shape index: {}]
  %s15 = inlined_call_operand.hbm [shape: f32[16,32], index: 15, kind: output, shape index: {}]
  %s16 = sld [smem:[#allocation0]]
  $region113: #{tpu_custom_call.1} parent=0
    _
  %s18 = ssub.s32 1, %s16
  %s19 = scalar_select 0, %s18, %s16
  $region1: #{tpu_custom_call.1} parent=0
    #allocation3 [shape = 'u8[8192]{0}', space=vmem, size = 0x2000, scoped, tag = 'input window, operand 0']
    #allocation4 [shape = 's32[2]{0}', space=sflag, size = 0x8, scoped, tag = 'scoped memory for tpu_custom_call.1']
    #allocation5 [shape = 's32[2]{0}', space=sflag, size = 0x8, scoped, tag = 'scoped memory for tpu_custom_call.1']
    #allocation6 [shape = 'u8[16384]{0}', space=vmem, size = 0x4000, scoped, tag = 'input window, operand 1, single buffered']
    #allocation7 [shape = 's32[1]{0}', space=sflag, size = 0x4, scoped, tag = 'scoped memory for tpu_custom_call.1']
    #allocation8 [shape = 'u8[512]{0}', space=vmem, size = 0x400, scoped, tag = 'input window, operand 2, single buffered']
    #allocation9 [shape = 'u8[8192]{0}', space=vmem, size = 0x2000, scoped, tag = 'output window, operand 0']
    %20 = vsyncpa [#allocation4], 0
    %s21 = scalar_lea.sflag [#allocation4], 1
    %22 = vsyncpa %s21, 0
    %23 = vsyncpa [#allocation7], 0
    %24 = vsyncpa [#allocation5], 0
    %s25 = scalar_lea.sflag [#allocation5], 1
    %26 = vsyncpa %s25, 0
    loop: start=0, step=1, limit=6
    $region2: #{tpu_custom_call.1} parent=1 // loop_pre_header
      _
    $region3: #{tpu_custom_call.1} parent=1 // loop_header
      %s28 = sphi 0, %s32
      %p29 = scmp.ge.s32.totalorder %s28, 6
      %s35 = sphi 0, %s47
      %s36 = sphi 0, %s43
      %s37 = sphi 0, %s35
      %s38 = sphi 0, %s36
      %s39 = sphi 0, %s37
      %s40 = sphi 0, %s38
      %s50 = sphi 0, %s52
      %s53 = sphi 0, %s50
      %s54 = sphi 0, %s53
      %s70 = sphi 0, %s54
      %s74 = sphi 0, %s74
      %s76 = sphi 0, %s74
      %s77 = sphi 0, %s76
      %s91 = sphi 0, %s77
      %s95 = sphi 0, %s95
      %s97 = sphi 0, %s95
      %s98 = sphi 0, %s97
      %s112 = sphi 0, %s98
      %s118 = sphi 0, %s120
      %s121 = sphi 0, %s118
      %s122 = sphi 0, %s121
      %s138 = sphi 0, %s122
      %s144 = sphi 0, %s146
      %s147 = sphi 0, %s144
      %s148 = sphi 0, %s147
      %s164 = sphi 0, %s148
      %s170 = sphi 0, %s172
      %s173 = sphi 0, %s170
      %s174 = sphi 0, %s173
      %s190 = sphi 0, %s174
      %s196 = sphi 0, %s198
      %s199 = sphi 0, %s196
      %s200 = sphi 0, %s199
      %s216 = sphi 0, %s200
      %s222 = sphi 0, %s224
      %s225 = sphi 0, %s222
      %s226 = sphi 0, %s225
      %s242 = sphi 0, %s226
      %s248 = sphi 0, %s250
      %s251 = sphi 0, %s248
      %s252 = sphi 0, %s251
      %s268 = sphi 0, %s252
      %s274 = sphi 0, %s276
      %s277 = sphi 0, %s274
      %s278 = sphi 0, %s277
      %s294 = sphi 0, %s278
      %s300 = sphi 0, %s302
      %s303 = sphi 0, %s300
      %s304 = sphi 0, %s303
      %s320 = sphi 0, %s304
      %s326 = sphi 0, %s328
      %s329 = sphi 0, %s326
      %s330 = sphi 0, %s329
      %s346 = sphi 0, %s330
      %s352 = sphi 0, %s354
      %s355 = sphi 0, %s352
      %s356 = sphi 0, %s355
      %s372 = sphi 0, %s356
      %s378 = sphi 0, %s380
      %s381 = sphi 0, %s378
      %s382 = sphi 0, %s381
      %s398 = sphi 0, %s382
      %s404 = sphi 0, %s406
      %s407 = sphi 0, %s404
      %s408 = sphi 0, %s407
      %s424 = sphi 0, %s408
      %s430 = sphi 0, %s432
      %s433 = sphi 0, %s430
      %s434 = sphi 0, %s433
      %s450 = sphi 0, %s434
    $region4: #{tpu_custom_call.1} parent=1 // loop_header_branch
      %31 = sbr.rel (%p29) target = $region8
    $region5: #{tpu_custom_call.1} parent=1 // loop_body
      %s33 = ssub.s32 %s28, 1
      %s34 = ssub.s32 %s28, 2
      %s41 = sadd.s32 1, %s36
      %p42 = scmp.ge.s32.totalorder %s41, 2
      %s43 = scalar_select %p42, 0, %s41
      %s44 = sadd.s32 1, %s35
      %s45 = scalar_select %p42, %s44, %s35
      %p46 = scmp.ge.s32.totalorder %s45, 2
      %s47 = scalar_select %p46, 0, %s45
      %s48 = ssub.s32 %s35, %s47
      %p49 = scmp.eq.s32.totalorder %s48, 0
      %s51 = sadd.s32 %s50, 1
      %s52 = scalar_select %p49, %s50, %s51
      %p55 = pneg %p49
      %p56 = scmp.eq.s32.totalorder %s28, 3
      %p57 = por %p55, %p56
      %p58 = scmp.ne.s32.totalorder %s50, %s53
      %p59 = scmp.eq.s32.totalorder %s28, 0
      %p60 = por %p58, %p59
      %p61 = scmp.ne.s32.totalorder %s50, %s53
      %p62 = scmp.eq.s32.totalorder %s33, 3
      %p63 = por %p61, %p62
      %p64 = scmp.ne.s32.totalorder %s53, %s54
      %p65 = scmp.eq.s32.totalorder %s33, 0
      %p66 = por %p64, %p65
      %p67 = scmp.ne.s32.totalorder %s53, %s54
      %p68 = scmp.eq.s32.totalorder %s34, 3
      %p69 = por %p67, %p68
      %p71 = scmp.ne.s32.totalorder %s54, %s70
      %p72 = scmp.eq.s32.totalorder %s34, 0
      %p73 = por %p71, %p72
      %s75 = sadd.s32 %s74, 1
      %p78 = scmp.eq.s32.totalorder %s28, 3
      %p79 = scmp.ne.s32.totalorder %s74, %s76
      %p80 = scmp.eq.s32.totalorder %s28, 0
      %p81 = por %p79, %p80
      %p82 = scmp.ne.s32.totalorder %s74, %s76
      %p83 = scmp.eq.s32.totalorder %s33, 3
      %p84 = por %p82, %p83
      %p85 = scmp.ne.s32.totalorder %s76, %s77
      %p86 = scmp.eq.s32.totalorder %s33, 0
      %p87 = por %p85, %p86
      %p88 = scmp.ne.s32.totalorder %s76, %s77
      %p89 = scmp.eq.s32.totalorder %s34, 3
      %p90 = por %p88, %p89
      %p92 = scmp.ne.s32.totalorder %s77, %s91
      %p93 = scmp.eq.s32.totalorder %s34, 0
      %p94 = por %p92, %p93
      %s96 = sadd.s32 %s95, 1
      %p99 = scmp.eq.s32.totalorder %s28, 3
      %p100 = scmp.ne.s32.totalorder %s95, %s97
      %p101 = scmp.eq.s32.totalorder %s28, 0
      %p102 = por %p100, %p101
      %p103 = scmp.ne.s32.totalorder %s95, %s97
      %p104 = scmp.eq.s32.totalorder %s33, 3
      %p105 = por %p103, %p104
      %p106 = scmp.ne.s32.totalorder %s97, %s98
      %p107 = scmp.eq.s32.totalorder %s33, 0
      %p108 = por %p106, %p107
      %p109 = scmp.ne.s32.totalorder %s97, %s98
      %p110 = scmp.eq.s32.totalorder %s34, 3
      %p111 = por %p109, %p110
      %p113 = scmp.ne.s32.totalorder %s98, %s112
      %p114 = scmp.eq.s32.totalorder %s34, 0
      %p115 = por %p113, %p114
      %s116 = ssub.s32 %s36, %s43
      %p117 = scmp.eq.s32.totalorder %s116, 0
      %s119 = sadd.s32 %s118, 1
      %s120 = scalar_select %p117, %s118, %s119
      %p123 = pneg %p117
      %p124 = scmp.eq.s32.totalorder %s28, 3
      %p125 = por %p123, %p124
      %p126 = scmp.ne.s32.totalorder %s118, %s121
      %p127 = scmp.eq.s32.totalorder %s28, 0
      %p128 = por %p126, %p127
      %p129 = scmp.ne.s32.totalorder %s118, %s121
      %p130 = scmp.eq.s32.totalorder %s33, 3
      %p131 = por %p129, %p130
      %p132 = scmp.ne.s32.totalorder %s121, %s122
      %p133 = scmp.eq.s32.totalorder %s33, 0
      %p134 = por %p132, %p133
      %p135 = scmp.ne.s32.totalorder %s121, %s122
      %p136 = scmp.eq.s32.totalorder %s34, 3
      %p137 = por %p135, %p136
      %p139 = scmp.ne.s32.totalorder %s122, %s138
      %p140 = scmp.eq.s32.totalorder %s34, 0
      %p141 = por %p139, %p140
      %s142 = ssub.s32 %s36, %s43
      %p143 = scmp.eq.s32.totalorder %s142, 0
      %s145 = sadd.s32 %s144, 1
      %s146 = scalar_select %p143, %s144, %s145
      %p149 = pneg %p143
      %p150 = scmp.eq.s32.totalorder %s28, 3
      %p151 = por %p149, %p150
      %p152 = scmp.ne.s32.totalorder %s144, %s147
      %p153 = scmp.eq.s32.totalorder %s28, 0
      %p154 = por %p152, %p153
      %p155 = scmp.ne.s32.totalorder %s144, %s147
      %p156 = scmp.eq.s32.totalorder %s33, 3
      %p157 = por %p155, %p156
      %p158 = scmp.ne.s32.totalorder %s147, %s148
      %p159 = scmp.eq.s32.totalorder %s33, 0
      %p160 = por %p158, %p159
      %p161 = scmp.ne.s32.totalorder %s147, %s148
      %p162 = scmp.eq.s32.totalorder %s34, 3
      %p163 = por %p161, %p162
      %p165 = scmp.ne.s32.totalorder %s148, %s164
      %p166 = scmp.eq.s32.totalorder %s34, 0
      %p167 = por %p165, %p166
      %s168 = ssub.s32 %s36, %s43
      %p169 = scmp.eq.s32.totalorder %s168, 0
      %s171 = sadd.s32 %s170, 1
      %s172 = scalar_select %p169, %s170, %s171
      %p175 = pneg %p169
      %p176 = scmp.eq.s32.totalorder %s28, 3
      %p177 = por %p175, %p176
      %p178 = scmp.ne.s32.totalorder %s170, %s173
      %p179 = scmp.eq.s32.totalorder %s28, 0
      %p180 = por %p178, %p179
      %p181 = scmp.ne.s32.totalorder %s170, %s173
      %p182 = scmp.eq.s32.totalorder %s33, 3
      %p183 = por %p181, %p182
      %p184 = scmp.ne.s32.totalorder %s173, %s174
      %p185 = scmp.eq.s32.totalorder %s33, 0
      %p186 = por %p184, %p185
      %p187 = scmp.ne.s32.totalorder %s173, %s174
      %p188 = scmp.eq.s32.totalorder %s34, 3
      %p189 = por %p187, %p188
      %p191 = scmp.ne.s32.totalorder %s174, %s190
      %p192 = scmp.eq.s32.totalorder %s34, 0
      %p193 = por %p191, %p192
      %s194 = ssub.s32 %s36, %s43
      %p195 = scmp.eq.s32.totalorder %s194, 0
      %s197 = sadd.s32 %s196, 1
      %s198 = scalar_select %p195, %s196, %s197
      %p201 = pneg %p195
      %p202 = scmp.eq.s32.totalorder %s28, 3
      %p203 = por %p201, %p202
      %p204 = scmp.ne.s32.totalorder %s196, %s199
      %p205 = scmp.eq.s32.totalorder %s28, 0
      %p206 = por %p204, %p205
      %p207 = scmp.ne.s32.totalorder %s196, %s199
      %p208 = scmp.eq.s32.totalorder %s33, 3
      %p209 = por %p207, %p208
      %p210 = scmp.ne.s32.totalorder %s199, %s200
      %p211 = scmp.eq.s32.totalorder %s33, 0
      %p212 = por %p210, %p211
      %p213 = scmp.ne.s32.totalorder %s199, %s200
      %p214 = scmp.eq.s32.totalorder %s34, 3
      %p215 = por %p213, %p214
      %p217 = scmp.ne.s32.totalorder %s200, %s216
      %p218 = scmp.eq.s32.totalorder %s34, 0
      %p219 = por %p217, %p218
      %s220 = ssub.s32 %s36, %s43
      %p221 = scmp.eq.s32.totalorder %s220, 0
      %s223 = sadd.s32 %s222, 1
      %s224 = scalar_select %p221, %s222, %s223
      %p227 = pneg %p221
      %p228 = scmp.eq.s32.totalorder %s28, 3
      %p229 = por %p227, %p228
      %p230 = scmp.ne.s32.totalorder %s222, %s225
      %p231 = scmp.eq.s32.totalorder %s28, 0
      %p232 = por %p230, %p231
      %p233 = scmp.ne.s32.totalorder %s222, %s225
      %p234 = scmp.eq.s32.totalorder %s33, 3
      %p235 = por %p233, %p234
      %p236 = scmp.ne.s32.totalorder %s225, %s226
      %p237 = scmp.eq.s32.totalorder %s33, 0
      %p238 = por %p236, %p237
      %p239 = scmp.ne.s32.totalorder %s225, %s226
      %p240 = scmp.eq.s32.totalorder %s34, 3
      %p241 = por %p239, %p240
      %p243 = scmp.ne.s32.totalorder %s226, %s242
      %p244 = scmp.eq.s32.totalorder %s34, 0
      %p245 = por %p243, %p244
      %s246 = ssub.s32 %s36, %s43
      %p247 = scmp.eq.s32.totalorder %s246, 0
      %s249 = sadd.s32 %s248, 1
      %s250 = scalar_select %p247, %s248, %s249
      %p253 = pneg %p247
      %p254 = scmp.eq.s32.totalorder %s28, 3
      %p255 = por %p253, %p254
      %p256 = scmp.ne.s32.totalorder %s248, %s251
      %p257 = scmp.eq.s32.totalorder %s28, 0
      %p258 = por %p256, %p257
      %p259 = scmp.ne.s32.totalorder %s248, %s251
      %p260 = scmp.eq.s32.totalorder %s33, 3
      %p261 = por %p259, %p260
      %p262 = scmp.ne.s32.totalorder %s251, %s252
      %p263 = scmp.eq.s32.totalorder %s33, 0
      %p264 = por %p262, %p263
      %p265 = scmp.ne.s32.totalorder %s251, %s252
      %p266 = scmp.eq.s32.totalorder %s34, 3
      %p267 = por %p265, %p266
      %p269 = scmp.ne.s32.totalorder %s252, %s268
      %p270 = scmp.eq.s32.totalorder %s34, 0
      %p271 = por %p269, %p270
      %s272 = ssub.s32 %s36, %s43
      %p273 = scmp.eq.s32.totalorder %s272, 0
      %s275 = sadd.s32 %s274, 1
      %s276 = scalar_select %p273, %s274, %s275
      %p279 = pneg %p273
      %p280 = scmp.eq.s32.totalorder %s28, 3
      %p281 = por %p279, %p280
      %p282 = scmp.ne.s32.totalorder %s274, %s277
      %p283 = scmp.eq.s32.totalorder %s28, 0
      %p284 = por %p282, %p283
      %p285 = scmp.ne.s32.totalorder %s274, %s277
      %p286 = scmp.eq.s32.totalorder %s33, 3
      %p287 = por %p285, %p286
      %p288 = scmp.ne.s32.totalorder %s277, %s278
      %p289 = scmp.eq.s32.totalorder %s33, 0
      %p290 = por %p288, %p289
      %p291 = scmp.ne.s32.totalorder %s277, %s278
      %p292 = scmp.eq.s32.totalorder %s34, 3
      %p293 = por %p291, %p292
      %p295 = scmp.ne.s32.totalorder %s278, %s294
      %p296 = scmp.eq.s32.totalorder %s34, 0
      %p297 = por %p295, %p296
      %s298 = ssub.s32 %s36, %s43
      %p299 = scmp.eq.s32.totalorder %s298, 0
      %s301 = sadd.s32 %s300, 1
      %s302 = scalar_select %p299, %s300, %s301
      %p305 = pneg %p299
      %p306 = scmp.eq.s32.totalorder %s28, 3
      %p307 = por %p305, %p306
      %p308 = scmp.ne.s32.totalorder %s300, %s303
      %p309 = scmp.eq.s32.totalorder %s28, 0
      %p310 = por %p308, %p309
      %p311 = scmp.ne.s32.totalorder %s300, %s303
      %p312 = scmp.eq.s32.totalorder %s33, 3
      %p313 = por %p311, %p312
      %p314 = scmp.ne.s32.totalorder %s303, %s304
      %p315 = scmp.eq.s32.totalorder %s33, 0
      %p316 = por %p314, %p315
      %p317 = scmp.ne.s32.totalorder %s303, %s304
      %p318 = scmp.eq.s32.totalorder %s34, 3
      %p319 = por %p317, %p318
      %p321 = scmp.ne.s32.totalorder %s304, %s320
      %p322 = scmp.eq.s32.totalorder %s34, 0
      %p323 = por %p321, %p322
      %s324 = ssub.s32 %s36, %s43
      %p325 = scmp.eq.s32.totalorder %s324, 0
      %s327 = sadd.s32 %s326, 1
      %s328 = scalar_select %p325, %s326, %s327
      %p331 = pneg %p325
      %p332 = scmp.eq.s32.totalorder %s28, 3
      %p333 = por %p331, %p332
      %p334 = scmp.ne.s32.totalorder %s326, %s329
      %p335 = scmp.eq.s32.totalorder %s28, 0
      %p336 = por %p334, %p335
      %p337 = scmp.ne.s32.totalorder %s326, %s329
      %p338 = scmp.eq.s32.totalorder %s33, 3
      %p339 = por %p337, %p338
      %p340 = scmp.ne.s32.totalorder %s329, %s330
      %p341 = scmp.eq.s32.totalorder %s33, 0
      %p342 = por %p340, %p341
      %p343 = scmp.ne.s32.totalorder %s329, %s330
      %p344 = scmp.eq.s32.totalorder %s34, 3
      %p345 = por %p343, %p344
      %p347 = scmp.ne.s32.totalorder %s330, %s346
      %p348 = scmp.eq.s32.totalorder %s34, 0
      %p349 = por %p347, %p348
      %s350 = ssub.s32 %s36, %s43
      %p351 = scmp.eq.s32.totalorder %s350, 0
      %s353 = sadd.s32 %s352, 1
      %s354 = scalar_select %p351, %s352, %s353
      %p357 = pneg %p351
      %p358 = scmp.eq.s32.totalorder %s28, 3
      %p359 = por %p357, %p358
      %p360 = scmp.ne.s32.totalorder %s352, %s355
      %p361 = scmp.eq.s32.totalorder %s28, 0
      %p362 = por %p360, %p361
      %p363 = scmp.ne.s32.totalorder %s352, %s355
      %p364 = scmp.eq.s32.totalorder %s33, 3
      %p365 = por %p363, %p364
      %p366 = scmp.ne.s32.totalorder %s355, %s356
      %p367 = scmp.eq.s32.totalorder %s33, 0
      %p368 = por %p366, %p367
      %p369 = scmp.ne.s32.totalorder %s355, %s356
      %p370 = scmp.eq.s32.totalorder %s34, 3
      %p371 = por %p369, %p370
      %p373 = scmp.ne.s32.totalorder %s356, %s372
      %p374 = scmp.eq.s32.totalorder %s34, 0
      %p375 = por %p373, %p374
      %s376 = ssub.s32 %s36, %s43
      %p377 = scmp.eq.s32.totalorder %s376, 0
      %s379 = sadd.s32 %s378, 1
      %s380 = scalar_select %p377, %s378, %s379
      %p383 = pneg %p377
      %p384 = scmp.eq.s32.totalorder %s28, 3
      %p385 = por %p383, %p384
      %p386 = scmp.ne.s32.totalorder %s378, %s381
      %p387 = scmp.eq.s32.totalorder %s28, 0
      %p388 = por %p386, %p387
      %p389 = scmp.ne.s32.totalorder %s378, %s381
      %p390 = scmp.eq.s32.totalorder %s33, 3
      %p391 = por %p389, %p390
      %p392 = scmp.ne.s32.totalorder %s381, %s382
      %p393 = scmp.eq.s32.totalorder %s33, 0
      %p394 = por %p392, %p393
      %p395 = scmp.ne.s32.totalorder %s381, %s382
      %p396 = scmp.eq.s32.totalorder %s34, 3
      %p397 = por %p395, %p396
      %p399 = scmp.ne.s32.totalorder %s382, %s398
      %p400 = scmp.eq.s32.totalorder %s34, 0
      %p401 = por %p399, %p400
      %s402 = ssub.s32 %s36, %s43
      %p403 = scmp.eq.s32.totalorder %s402, 0
      %s405 = sadd.s32 %s404, 1
      %s406 = scalar_select %p403, %s404, %s405
      %p409 = pneg %p403
      %p410 = scmp.eq.s32.totalorder %s28, 3
      %p411 = por %p409, %p410
      %p412 = scmp.ne.s32.totalorder %s404, %s407
      %p413 = scmp.eq.s32.totalorder %s28, 0
      %p414 = por %p412, %p413
      %p415 = scmp.ne.s32.totalorder %s404, %s407
      %p416 = scmp.eq.s32.totalorder %s33, 3
      %p417 = por %p415, %p416
      %p418 = scmp.ne.s32.totalorder %s407, %s408
      %p419 = scmp.eq.s32.totalorder %s33, 0
      %p420 = por %p418, %p419
      %p421 = scmp.ne.s32.totalorder %s407, %s408
      %p422 = scmp.eq.s32.totalorder %s34, 3
      %p423 = por %p421, %p422
      %p425 = scmp.ne.s32.totalorder %s408, %s424
      %p426 = scmp.eq.s32.totalorder %s34, 0
      %p427 = por %p425, %p426
      %s428 = ssub.s32 %s35, %s47
      %p429 = scmp.eq.s32.totalorder %s428, 0
      %s431 = sadd.s32 %s430, 1
      %s432 = scalar_select %p429, %s430, %s431
      %p435 = pneg %p429
      %p436 = scmp.eq.s32.totalorder %s28, 3
      %p437 = por %p435, %p436
      %p438 = scmp.ne.s32.totalorder %s430, %s433
      %p439 = scmp.eq.s32.totalorder %s28, 0
      %p440 = por %p438, %p439
      %p441 = scmp.ne.s32.totalorder %s430, %s433
      %p442 = scmp.eq.s32.totalorder %s33, 3
      %p443 = por %p441, %p442
      %p444 = scmp.ne.s32.totalorder %s433, %s434
      %p445 = scmp.eq.s32.totalorder %s33, 0
      %p446 = por %p444, %p445
      %p447 = scmp.ne.s32.totalorder %s433, %s434
      %p448 = scmp.eq.s32.totalorder %s34, 3
      %p449 = por %p447, %p448
      %p451 = scmp.ne.s32.totalorder %s434, %s450
      %p452 = scmp.eq.s32.totalorder %s34, 0
      %p453 = por %p451, %p452
      %p454 = scmp.le.s32.totalorder 1, %s28
      %p455 = scmp.lt.s32.totalorder %s28, 5
      %p456 = pnand %p454, %p455
      %p457 = pneg %p456
      // Predicated region
      $region9: #{tpu_custom_call.1} parent=5 // pred_check
        _
      $region10: #{tpu_custom_call.1} parent=5 // pred_check_branch
        %459 = sbr.rel (%p456) target = $region12
      $region11: #{tpu_custom_call.1} parent=5 // pred_region
        %s460 = ssub.s32 %s28, 1
        // Predicated region
        $region13: #{tpu_custom_call.1} parent=11 // pred_check
          %p461 = pneg %p87
        $region14: #{tpu_custom_call.1} parent=11 // pred_check_branch
          %463 = sbr.rel (%p461) target = $region16
        $region15: #{tpu_custom_call.1} parent=11 // pred_region
          %s465 = ssub.s32 512, 512
          %466 = vsyncadd [#allocation7], %s465
          %s467 = sshll.u32 [#allocation6], 4
          %s468 = int_to_ptr.vmem [resolvable:$true] %s467
          %473 = dma.hbm_to_vmem [thread:$0]  %s1, 512, %s468, [#allocation7], 128, 128, 8
        $region16: #{tpu_custom_call.1} parent=11 // pred_fallthru
          _
        // Predicated region
        $region17: #{tpu_custom_call.1} parent=11 // pred_check
          %p474 = pneg %p108
        $region18: #{tpu_custom_call.1} parent=11 // pred_check_branch
          %476 = sbr.rel (%p474) target = $region20
        $region19: #{tpu_custom_call.1} parent=11 // pred_region
          %s478 = ssub.s32 16, 16
          %479 = vsyncadd [#allocation7], %s478
          %s481 = sshll.u32 [#allocation8], 4
          %s482 = int_to_ptr.vmem [resolvable:$true] %s481
          %484 = dma.hbm_to_vmem [thread:$0]  %s2, 16, %s482, [#allocation7]
        $region20: #{tpu_custom_call.1} parent=11 // pred_fallthru
          _
      $region12: #{tpu_custom_call.1} parent=5 // pred_fallthru
        _
      %p485 = scmp.lt.s32.totalorder %s28, 4
      // Predicated region
      $region21: #{tpu_custom_call.1} parent=5 // pred_check
        %p486 = pneg %p485
      $region22: #{tpu_custom_call.1} parent=5 // pred_check_branch
        %488 = sbr.rel (%p486) target = $region24
      $region23: #{tpu_custom_call.1} parent=5 // pred_region
        // Predicated region
        $region25: #{tpu_custom_call.1} parent=23 // pred_check
          %p489 = pneg %p60
        $region26: #{tpu_custom_call.1} parent=23 // pred_check_branch
          %491 = sbr.rel (%p489) target = $region28
        $region27: #{tpu_custom_call.1} parent=23 // pred_region
          %s492 = sand.u32 %s50, 1
          %s493 = scalar_lea.sflag [#allocation4], %s492
          %s494 = sand.u32 %s50, 1
          %s495 = smul.addr %s494, 8
          %s496 = scalar_lea.vmem [#allocation3], %s495
          %s498 = ssub.s32 128, 128
          %499 = vsyncadd %s493, %s498
          %s500 = smul.addr %s35, 128
          %s501 = scalar_lea.hbm %s0, %s500
          %s503 = sshll.u32 %s496, 4
          %s504 = int_to_ptr.vmem [resolvable:$true] %s503
          %506 = dma.hbm_to_vmem [thread:$0]  %s501, 128, %s504, %s493
        $region28: #{tpu_custom_call.1} parent=23 // pred_fallthru
          _
        // Predicated region
        $region29: #{tpu_custom_call.1} parent=23 // pred_check
          %p507 = pneg %p128
        $region30: #{tpu_custom_call.1} parent=23 // pred_check_branch
          %509 = sbr.rel (%p507) target = $region32
        $region31: #{tpu_custom_call.1} parent=23 // pred_region
          %p510 = scmp.lt.s32.totalorder %s36, 1
          %s511 = scalar_select %p510, %s36, 1
          %s512 = smul.addr %s511, 4
          %s513 = smul.addr %s512, 8
          %s514 = scalar_lea.vmem %s3, %s513
        $region32: #{tpu_custom_call.1} parent=23 // pred_fallthru
          _
        // Predicated region
        $region33: #{tpu_custom_call.1} parent=23 // pred_check
          %p515 = pneg %p154
        $region34: #{tpu_custom_call.1} parent=23 // pred_check_branch
          %517 = sbr.rel (%p515) target = $region36
        $region35: #{tpu_custom_call.1} parent=23 // pred_region
          %p518 = scmp.lt.s32.totalorder %s36, 1
          %s519 = scalar_select %p518, %s36, 1
          %s520 = scalar_lea.vmem %s4, %s519
        $region36: #{tpu_custom_call.1} parent=23 // pred_fallthru
          _
        // Predicated region
        $region37: #{tpu_custom_call.1} parent=23 // pred_check
          %p521 = pneg %p180
        $region38: #{tpu_custom_call.1} parent=23 // pred_check_branch
          %523 = sbr.rel (%p521) target = $region40
        $region39: #{tpu_custom_call.1} parent=23 // pred_region
          %p524 = scmp.lt.s32.totalorder %s36, 1
          %s525 = scalar_select %p524, %s36, 1
          %s526 = smul.addr %s525, 4
          %s527 = smul.addr %s526, 8
          %s528 = scalar_lea.vmem %s5, %s527
        $region40: #{tpu_custom_call.1} parent=23 // pred_fallthru
          _
        // Predicated region
        $region41: #{tpu_custom_call.1} parent=23 // pred_check
          %p529 = pneg %p206
        $region42: #{tpu_custom_call.1} parent=23 // pred_check_branch
          %531 = sbr.rel (%p529) target = $region44
        $region43: #{tpu_custom_call.1} parent=23 // pred_region
          %p532 = scmp.lt.s32.totalorder %s36, 1
          %s533 = scalar_select %p532, %s36, 1
          %s534 = scalar_lea.vmem %s6, %s533
        $region44: #{tpu_custom_call.1} parent=23 // pred_fallthru
          _
        // Predicated region
        $region45: #{tpu_custom_call.1} parent=23 // pred_check
          %p535 = pneg %p232
        $region46: #{tpu_custom_call.1} parent=23 // pred_check_branch
          %537 = sbr.rel (%p535) target = $region48
        $region47: #{tpu_custom_call.1} parent=23 // pred_region
          %p538 = scmp.lt.s32.totalorder %s36, 1
          %s539 = scalar_select %p538, %s36, 1
          %s540 = scalar_lea.vmem %s7, %s539
        $region48: #{tpu_custom_call.1} parent=23 // pred_fallthru
          _
        // Predicated region
        $region49: #{tpu_custom_call.1} parent=23 // pred_check
          %p541 = pneg %p258
        $region50: #{tpu_custom_call.1} parent=23 // pred_check_branch
          %543 = sbr.rel (%p541) target = $region52
        $region51: #{tpu_custom_call.1} parent=23 // pred_region
          %p544 = scmp.lt.s32.totalorder %s36, 1
          %s545 = scalar_select %p544, %s36, 1
          %s546 = scalar_lea.vmem %s8, %s545
        $region52: #{tpu_custom_call.1} parent=23 // pred_fallthru
          _
        // Predicated region
        $region53: #{tpu_custom_call.1} parent=23 // pred_check
          %p547 = pneg %p284
        $region54: #{tpu_custom_call.1} parent=23 // pred_check_branch
          %549 = sbr.rel (%p547) target = $region56
        $region55: #{tpu_custom_call.1} parent=23 // pred_region
          %p550 = scmp.lt.s32.totalorder %s36, 1
          %s551 = scalar_select %p550, %s36, 1
          %s552 = scalar_lea.vmem %s9, %s551
        $region56: #{tpu_custom_call.1} parent=23 // pred_fallthru
          _
        // Predicated region
        $region57: #{tpu_custom_call.1} parent=23 // pred_check
          %p553 = pneg %p310
        $region58: #{tpu_custom_call.1} parent=23 // pred_check_branch
          %555 = sbr.rel (%p553) target = $region60
        $region59: #{tpu_custom_call.1} parent=23 // pred_region
          %p556 = scmp.lt.s32.totalorder %s36, 1
          %s557 = scalar_select %p556, %s36, 1
          %s558 = scalar_lea.vmem %s10, %s557
        $region60: #{tpu_custom_call.1} parent=23 // pred_fallthru
          _
        // Predicated region
        $region61: #{tpu_custom_call.1} parent=23 // pred_check
          %p559 = pneg %p336
        $region62: #{tpu_custom_call.1} parent=23 // pred_check_branch
          %561 = sbr.rel (%p559) target = $region64
        $region63: #{tpu_custom_call.1} parent=23 // pred_region
          %p562 = scmp.lt.s32.totalorder %s36, 1
          %s563 = scalar_select %p562, %s36, 1
          %s564 = smul.addr %s563, 4
          %s565 = smul.addr %s564, 8
          %s566 = scalar_lea.vmem %s11, %s565
        $region64: #{tpu_custom_call.1} parent=23 // pred_fallthru
          _
        // Predicated region
        $region65: #{tpu_custom_call.1} parent=23 // pred_check
          %p567 = pneg %p362
        $region66: #{tpu_custom_call.1} parent=23 // pred_check_branch
          %569 = sbr.rel (%p567) target = $region68
        $region67: #{tpu_custom_call.1} parent=23 // pred_region
          %p570 = scmp.lt.s32.totalorder %s36, 1
          %s571 = scalar_select %p570, %s36, 1
          %s572 = scalar_lea.vmem %s12, %s571
        $region68: #{tpu_custom_call.1} parent=23 // pred_fallthru
          _
        // Predicated region
        $region69: #{tpu_custom_call.1} parent=23 // pred_check
          %p573 = pneg %p388
        $region70: #{tpu_custom_call.1} parent=23 // pred_check_branch
          %575 = sbr.rel (%p573) target = $region72
        $region71: #{tpu_custom_call.1} parent=23 // pred_region
          %p576 = scmp.lt.s32.totalorder %s36, 1
          %s577 = scalar_select %p576, %s36, 1
          %s578 = smul.addr %s577, 8
          %s579 = smul.addr %s578, 8
          %s580 = scalar_lea.vmem %s13, %s579
        $region72: #{tpu_custom_call.1} parent=23 // pred_fallthru
          _
        // Predicated region
        $region73: #{tpu_custom_call.1} parent=23 // pred_check
          %p581 = pneg %p414
        $region74: #{tpu_custom_call.1} parent=23 // pred_check_branch
          %583 = sbr.rel (%p581) target = $region76
        $region75: #{tpu_custom_call.1} parent=23 // pred_region
          %p584 = scmp.lt.s32.totalorder %s36, 1
          %s585 = scalar_select %p584, %s36, 1
          %s586 = scalar_lea.vmem %s14, %s585
        $region76: #{tpu_custom_call.1} parent=23 // pred_fallthru
          _
      $region24: #{tpu_custom_call.1} parent=5 // pred_fallthru
        _
      %p587 = scmp.le.s32.totalorder 1, %s28
      %p588 = scmp.lt.s32.totalorder %s28, 5
      %p589 = pnand %p587, %p588
      %p590 = pneg %p589
      // Predicated region
      $region77: #{tpu_custom_call.1} parent=5 // pred_check
        _
      $region78: #{tpu_custom_call.1} parent=5 // pred_check_branch
        %592 = sbr.rel (%p589) target = $region80
      $region79: #{tpu_custom_call.1} parent=5 // pred_region
        %s593 = ssub.s32 %s28, 1
        %s594 = sand.u32 %s53, 1
        %s595 = scalar_lea.sflag [#allocation4], %s594
        %s596 = sand.u32 %s53, 1
        %s597 = smul.addr %s596, 8
        %s598 = scalar_lea.vmem [#allocation3], %s597
        // Predicated region
        $region81: #{tpu_custom_call.1} parent=79 // pred_check
          %p599 = pneg %p66
        $region82: #{tpu_custom_call.1} parent=79 // pred_check_branch
          %601 = sbr.rel (%p599) target = $region84
        $region83: #{tpu_custom_call.1} parent=79 // pred_region
          %602 = dma.done %s595, 128
        $region84: #{tpu_custom_call.1} parent=79 // pred_fallthru
          _
        // Predicated region
        $region85: #{tpu_custom_call.1} parent=79 // pred_check
          %p603 = pneg %p87
        $region86: #{tpu_custom_call.1} parent=79 // pred_check_branch
          %605 = sbr.rel (%p603) target = $region88
        $region87: #{tpu_custom_call.1} parent=79 // pred_region
          %606 = dma.done [#allocation7], 512
        $region88: #{tpu_custom_call.1} parent=79 // pred_fallthru
          _
        // Predicated region
        $region89: #{tpu_custom_call.1} parent=79 // pred_check
          %p607 = pneg %p108
        $region90: #{tpu_custom_call.1} parent=79 // pred_check_branch
          %609 = sbr.rel (%p607) target = $region92
        $region91: #{tpu_custom_call.1} parent=79 // pred_region
          %610 = dma.done [#allocation7], 16
        $region92: #{tpu_custom_call.1} parent=79 // pred_fallthru
          _
        %s611 = sand.u32 %s53, 1
        %s612 = scalar_lea.sflag [#allocation4], %s611
        %s613 = sand.u32 %s53, 1
        %s614 = smul.addr %s613, 8
        %s615 = scalar_lea.vmem [#allocation3], %s614
        %p616 = pneg %p66
        %p617 = pneg %p63
        %p618 = pneg %p87
        %p619 = pneg %p84
        %p620 = pneg %p108
        %p621 = pneg %p105
        %p622 = scmp.lt.s32.totalorder %s38, 1
        %s623 = scalar_select %p622, %s38, 1
        %s624 = smul.addr %s623, 4
        %s625 = smul.addr %s624, 8
        %s626 = scalar_lea.vmem %s3, %s625
        %p627 = pneg %p134
        %p628 = pneg %p131
        %p629 = scmp.lt.s32.totalorder %s38, 1
        %s630 = scalar_select %p629, %s38, 1
        %s631 = scalar_lea.vmem %s4, %s630
        %p632 = pneg %p160
        %p633 = pneg %p157
        %p634 = scmp.lt.s32.totalorder %s38, 1
        %s635 = scalar_select %p634, %s38, 1
        %s636 = smul.addr %s635, 4
        %s637 = smul.addr %s636, 8
        %s638 = scalar_lea.vmem %s5, %s637
        %p639 = pneg %p186
        %p640 = pneg %p183
        %p641 = scmp.lt.s32.totalorder %s38, 1
        %s642 = scalar_select %p641, %s38, 1
        %s643 = scalar_lea.vmem %s6, %s642
        %p644 = pneg %p212
        %p645 = pneg %p209
        %p646 = scmp.lt.s32.totalorder %s38, 1
        %s647 = scalar_select %p646, %s38, 1
        %s648 = scalar_lea.vmem %s7, %s647
        %p649 = pneg %p238
        %p650 = pneg %p235
        %p651 = scmp.lt.s32.totalorder %s38, 1
        %s652 = scalar_select %p651, %s38, 1
        %s653 = scalar_lea.vmem %s8, %s652
        %p654 = pneg %p264
        %p655 = pneg %p261
        %p656 = scmp.lt.s32.totalorder %s38, 1
        %s657 = scalar_select %p656, %s38, 1
        %s658 = scalar_lea.vmem %s9, %s657
        %p659 = pneg %p290
        %p660 = pneg %p287
        %p661 = scmp.lt.s32.totalorder %s38, 1
        %s662 = scalar_select %p661, %s38, 1
        %s663 = scalar_lea.vmem %s10, %s662
        %p664 = pneg %p316
        %p665 = pneg %p313
        %p666 = scmp.lt.s32.totalorder %s38, 1
        %s667 = scalar_select %p666, %s38, 1
        %s668 = smul.addr %s667, 4
        %s669 = smul.addr %s668, 8
        %s670 = scalar_lea.vmem %s11, %s669
        %p671 = pneg %p342
        %p672 = pneg %p339
        %p673 = scmp.lt.s32.totalorder %s38, 1
        %s674 = scalar_select %p673, %s38, 1
        %s675 = scalar_lea.vmem %s12, %s674
        %p676 = pneg %p368
        %p677 = pneg %p365
        %p678 = scmp.lt.s32.totalorder %s38, 1
        %s679 = scalar_select %p678, %s38, 1
        %s680 = smul.addr %s679, 8
        %s681 = smul.addr %s680, 8
        %s682 = scalar_lea.vmem %s13, %s681
        %p683 = pneg %p394
        %p684 = pneg %p391
        %p685 = scmp.lt.s32.totalorder %s38, 1
        %s686 = scalar_select %p685, %s38, 1
        %s687 = scalar_lea.vmem %s14, %s686
        %p688 = pneg %p420
        %p689 = pneg %p417
        %p690 = pneg %p446
        %p691 = pneg %p443
        %s692 = sand.u32 %s433, 1
        %s693 = scalar_lea.sflag [#allocation5], %s692
        %s694 = sand.u32 %s433, 1
        %s695 = smul.addr %s694, 8
        %s696 = scalar_lea.vmem [#allocation9], %s695
        %p697 = scmp.lt.s32.totalorder %s38, 1
        %s698 = scalar_select %p697, %s38, 1
        %s699 = smul.addr %s698, 4
        %s700 = smul.addr %s699, 8
        %s701 = scalar_lea.vmem %s3, %s700
        %p702 = scmp.lt.s32.totalorder %s38, 1
        %s703 = scalar_select %p702, %s38, 1
        %s704 = scalar_lea.vmem %s4, %s703
        %p705 = scmp.lt.s32.totalorder %s38, 1
        %s706 = scalar_select %p705, %s38, 1
        %s707 = smul.addr %s706, 4
        %s708 = smul.addr %s707, 8
        %s709 = scalar_lea.vmem %s5, %s708
        %p710 = scmp.lt.s32.totalorder %s38, 1
        %s711 = scalar_select %p710, %s38, 1
        %s712 = scalar_lea.vmem %s6, %s711
        %p713 = scmp.lt.s32.totalorder %s38, 1
        %s714 = scalar_select %p713, %s38, 1
        %s715 = scalar_lea.vmem %s7, %s714
        %p716 = scmp.lt.s32.totalorder %s38, 1
        %s717 = scalar_select %p716, %s38, 1
        %s718 = scalar_lea.vmem %s8, %s717
        %p719 = scmp.lt.s32.totalorder %s38, 1
        %s720 = scalar_select %p719, %s38, 1
        %s721 = scalar_lea.vmem %s9, %s720
        %p722 = scmp.lt.s32.totalorder %s38, 1
        %s723 = scalar_select %p722, %s38, 1
        %s724 = scalar_lea.vmem %s10, %s723
        %p725 = scmp.lt.s32.totalorder %s38, 1
        %s726 = scalar_select %p725, %s38, 1
        %s727 = smul.addr %s726, 4
        %s728 = smul.addr %s727, 8
        %s729 = scalar_lea.vmem %s11, %s728
        %p730 = scmp.lt.s32.totalorder %s38, 1
        %s731 = scalar_select %p730, %s38, 1
        %s732 = scalar_lea.vmem %s12, %s731
        %p733 = scmp.lt.s32.totalorder %s38, 1
        %s734 = scalar_select %p733, %s38, 1
        %s735 = smul.addr %s734, 8
        %s736 = smul.addr %s735, 8
        %s737 = scalar_lea.vmem %s13, %s736
        %p738 = scmp.lt.s32.totalorder %s38, 1
        %s739 = scalar_select %p738, %s38, 1
        %s740 = scalar_lea.vmem %s14, %s739
        %p741 = scmp.eq.s32.totalorder %s38, 0
        // Predicated region
        $region93: #{tpu_custom_call.1} parent=79 // pred_check
          %p742 = pneg %p741
        $region94: #{tpu_custom_call.1} parent=79 // pred_check_branch
          %744 = sbr.rel (%p742) target = $region96
        $region95: #{tpu_custom_call.1} parent=79 // pred_region
          %v745 = vld [vmem:[%s598] sm:$0xff]
          %vm746 = vcmask 261120
          %747 = vst.msk [vmem:[#allocation2] sm:$0xff] %vm746, %v745
        $region96: #{tpu_custom_call.1} parent=79 // pred_fallthru
          _
        %v748 = vld [vmem:[#allocation2] sm:$0xff]
        %v749 = vld [vmem:[%s701] sm:$0xff]
        %v750 = vld [vmem:[%s701 + $0x8] sm:$0xff]
        %v751 = vld [vmem:[%s701 + $0x10] sm:$0xff]
        %v752 = vld [vmem:[%s701 + $0x18] sm:$0xff]
        %v753 = vld [vmem:[%s704] sm:$0x1]
        %v755 = vlaneseq
        %v756 = vshrl.u32 %v755, 7
        %v757 = vsub.s32 0, %v756
        %v758 = vrot.slane %v753, %v757
        %vm760 = vcmask 261120
        %v762 = vsel %vm760, %v748, 0
        %764 = vmatprep.subr.mxu0 0.0
        %765 = vmatpush1.msra.mxu0 0.0
        %766 = vmatprep.subr.mxu0 0.0
        %767 = vmatpush1.msra.mxu0 0.0
        %768 = vmatprep.subr.mxu0 0.0
        %769 = vmatpush1.msra.mxu0 0.0
        %770 = vmatprep.subr.mxu0 0.0
        %771 = vmatpush1.msra.mxu0 0.0
        %772 = vmatprep.subr.mxu0 0.0
        %773 = vmatpush1.msra.mxu0 0.0
        %774 = vmatprep.subr.mxu0 0.0
        %775 = vmatpush1.msra.mxu0 0.0
        %776 = vmatprep.subr.mxu0 0.0
        %777 = vmatpush1.msra.mxu0 0.0
        %778 = vmatprep.subr.mxu0 0.0
        %779 = vmatpush1.msra.mxu0 0.0
        %780 = vmatprep.subr.mxu0 0.0
        %781 = vmatpush1.msra.mxu0 0.0
        %782 = vmatprep.subr.mxu0 0.0
        %783 = vmatpush1.msra.mxu0 0.0
        %784 = vmatprep.subr.mxu0 0.0
        %785 = vmatpush1.msra.mxu0 0.0
        %786 = vmatprep.subr.mxu0 0.0
        %787 = vmatpush1.msra.mxu0 0.0
        %788 = vmatprep.subr.mxu0 0.0
        %789 = vmatpush1.msra.mxu0 %v752
        %790 = vmatprep.subr.mxu0 0.0
        %791 = vmatpush1.msra.mxu0 %v751
        %792 = vmatprep.subr.mxu0 0.0
        %793 = vmatpush1.msra.mxu0 %v750
        %794 = vmatprep.subr.mxu0 0.0
        %795 = vmatpush1.msra.mxu0 %v749
        %796 = vmatprep.subr.mxu0 0.0
        %797 = vmatpush2.msra.mxu0 0.0
        %798 = vmatprep.subr.mxu0 0.0
        %799 = vmatpush2.msra.mxu0 0.0
        %800 = vmatprep.subr.mxu0 0.0
        %801 = vmatpush2.msra.mxu0 0.0
        %802 = vmatprep.subr.mxu0 0.0
        %803 = vmatpush2.msra.mxu0 0.0
        %804 = vmatprep.subr.mxu0 0.0
        %805 = vmatpush2.msra.mxu0 0.0
        %806 = vmatprep.subr.mxu0 0.0
        %807 = vmatpush2.msra.mxu0 0.0
        %808 = vmatprep.subr.mxu0 0.0
        %809 = vmatpush2.msra.mxu0 0.0
        %810 = vmatprep.subr.mxu0 0.0
        %811 = vmatpush2.msra.mxu0 0.0
        %812 = vmatprep.subr.mxu0 0.0
        %813 = vmatpush2.msra.mxu0 0.0
        %814 = vmatprep.subr.mxu0 0.0
        %815 = vmatpush2.msra.mxu0 0.0
        %816 = vmatprep.subr.mxu0 0.0
        %817 = vmatpush2.msra.mxu0 0.0
        %818 = vmatprep.subr.mxu0 0.0
        %819 = vmatpush2.msra.mxu0 0.0
        %820 = vmatprep.subr.mxu0 0.0
        %821 = vmatpush2.msra.mxu0 0.0
        %822 = vmatprep.subr.mxu0 0.0
        %823 = vmatpush2.msra.mxu0 0.0
        %824 = vmatprep.subr.mxu0 0.0
        %825 = vmatpush2.msra.mxu0 0.0
        %826 = vmatprep.subr.mxu0 0.0
        %827 = vmatpush2.msra.mxu0 0.0
        %828 = vmatprep.mubr.f32.mxu0 0.0
        %829 = vmatmul.mubr.f32.gmra.mxu0 %v762
        %v830 = vpop.f32.mrf.mxu0
        %v831 = vadd.f32 %v758, %v830
        %v832 = vpop.f32.mrf.mxu0
        %833 = vdwg.mxu0
        %835 = vrot.lane.b32.xlu0 %v831, 120
        %v836 = vpop.permute.xlu0 %835
        %837 = vrot.lane.b32.xlu0 %v831, 112
        %v838 = vpop.permute.xlu0 %837
        %839 = vrot.lane.b32.xlu0 %v831, 104
        %v840 = vpop.permute.xlu0 %839
        %841 = vrot.lane.b32.xlu0 %v831, 96
        %v842 = vpop.permute.xlu0 %841
        %vm843 = vcmask 64512
        %v844 = vsel %vm843, %v831, 0
        %v846 = vsel %vm843, %v842, 0
        %848 = vmatprep.subr.mxu0 0.0
        %849 = vmatpush1.xpose.msra.mxu0 0.0
        %850 = vmatprep.subr.mxu0 0.0
        %851 = vmatpush1.xpose.msra.mxu0 0.0
        %852 = vmatprep.subr.mxu0 0.0
        %853 = vmatpush1.xpose.msra.mxu0 0.0
        %854 = vmatprep.subr.mxu0 0.0
        %855 = vmatpush1.xpose.msra.mxu0 0.0
        %856 = vmatprep.subr.mxu0 0.0
        %857 = vmatpush1.xpose.msra.mxu0 0.0
        %858 = vmatprep.subr.mxu0 0.0
        %859 = vmatpush1.xpose.msra.mxu0 0.0
        %860 = vmatprep.subr.mxu0 0.0
        %861 = vmatpush1.xpose.msra.mxu0 0.0
        %862 = vmatprep.subr.mxu0 0.0
        %863 = vmatpush1.xpose.msra.mxu0 0.0
        %864 = vmatprep.subr.mxu0 0.0
        %865 = vmatpush1.xpose.msra.mxu0 0.0
        %866 = vmatprep.subr.mxu0 0.0
        %867 = vmatpush1.xpose.msra.mxu0 0.0
        %868 = vmatprep.subr.mxu0 0.0
        %869 = vmatpush1.xpose.msra.mxu0 0.0
        %870 = vmatprep.subr.mxu0 0.0
        %871 = vmatpush1.xpose.msra.mxu0 0.0
        %872 = vmatprep.subr.mxu0 0.0
        %873 = vmatpush1.xpose.msra.mxu0 0.0
        %874 = vmatprep.subr.mxu0 0.0
        %875 = vmatpush1.xpose.msra.mxu0 0.0
        %876 = vmatprep.subr.mxu0 0.0
        %877 = vmatpush1.xpose.msra.mxu0 0.0
        %878 = vmatprep.subr.mxu0 0.0
        %879 = vmatpush1.xpose.msra.mxu0 %v846
        %880 = vmatprep.subr.mxu0 0.0
        %881 = vmatpush2.xpose.msra.mxu0 0.0
        %882 = vmatprep.subr.mxu0 0.0
        %883 = vmatpush2.xpose.msra.mxu0 0.0
        %884 = vmatprep.subr.mxu0 0.0
        %885 = vmatpush2.xpose.msra.mxu0 0.0
        %886 = vmatprep.subr.mxu0 0.0
        %887 = vmatpush2.xpose.msra.mxu0 0.0
        %888 = vmatprep.subr.mxu0 0.0
        %889 = vmatpush2.xpose.msra.mxu0 0.0
        %890 = vmatprep.subr.mxu0 0.0
        %891 = vmatpush2.xpose.msra.mxu0 0.0
        %892 = vmatprep.subr.mxu0 0.0
        %893 = vmatpush2.xpose.msra.mxu0 0.0
        %894 = vmatprep.subr.mxu0 0.0
        %895 = vmatpush2.xpose.msra.mxu0 0.0
        %896 = vmatprep.subr.mxu0 0.0
        %897 = vmatpush2.xpose.msra.mxu0 0.0
        %898 = vmatprep.subr.mxu0 0.0
        %899 = vmatpush2.xpose.msra.mxu0 0.0
        %900 = vmatprep.subr.mxu0 0.0
        %901 = vmatpush2.xpose.msra.mxu0 0.0
        %902 = vmatprep.subr.mxu0 0.0
        %903 = vmatpush2.xpose.msra.mxu0 0.0
        %904 = vmatprep.subr.mxu0 0.0
        %905 = vmatpush2.xpose.msra.mxu0 0.0
        %906 = vmatprep.subr.mxu0 0.0
        %907 = vmatpush2.xpose.msra.mxu0 0.0
        %908 = vmatprep.subr.mxu0 0.0
        %909 = vmatpush2.xpose.msra.mxu0 0.0
        %910 = vmatprep.subr.mxu0 0.0
        %911 = vmatpush2.xpose.msra.mxu0 0.0
        %912 = vmatprep.mubr.f32.mxu0 0.0
        %913 = vmatmul.mubr.f32.gmra.mxu0 %v844
        %v914 = vpop.f32.mrf.mxu0
        %v915 = vadd.f32 0.0, %v914
        %v916 = vpop.f32.mrf.mxu0
        %917 = vdwg.mxu0
        %918 = vrot.lane.b32.xlu0 %v836, 96
        %v919 = vpop.permute.xlu0 %918
        %v920 = vsel %vm843, %v836, 0
        %v922 = vsel %vm843, %v919, 0
        %924 = vmatprep.subr.mxu0 0.0
        %925 = vmatpush1.xpose.msra.mxu0 0.0
        %926 = vmatprep.subr.mxu0 0.0
        %927 = vmatpush1.xpose.msra.mxu0 0.0
        %928 = vmatprep.subr.mxu0 0.0
        %929 = vmatpush1.xpose.msra.mxu0 0.0
        %930 = vmatprep.subr.mxu0 0.0
        %931 = vmatpush1.xpose.msra.mxu0 0.0
        %932 = vmatprep.subr.mxu0 0.0
        %933 = vmatpush1.xpose.msra.mxu0 0.0
        %934 = vmatprep.subr.mxu0 0.0
        %935 = vmatpush1.xpose.msra.mxu0 0.0
        %936 = vmatprep.subr.mxu0 0.0
        %937 = vmatpush1.xpose.msra.mxu0 0.0
        %938 = vmatprep.subr.mxu0 0.0
        %939 = vmatpush1.xpose.msra.mxu0 0.0
        %940 = vmatprep.subr.mxu0 0.0
        %941 = vmatpush1.xpose.msra.mxu0 0.0
        %942 = vmatprep.subr.mxu0 0.0
        %943 = vmatpush1.xpose.msra.mxu0 0.0
        %944 = vmatprep.subr.mxu0 0.0
        %945 = vmatpush1.xpose.msra.mxu0 0.0
        %946 = vmatprep.subr.mxu0 0.0
        %947 = vmatpush1.xpose.msra.mxu0 0.0
        %948 = vmatprep.subr.mxu0 0.0
        %949 = vmatpush1.xpose.msra.mxu0 0.0
        %950 = vmatprep.subr.mxu0 0.0
        %951 = vmatpush1.xpose.msra.mxu0 0.0
        %952 = vmatprep.subr.mxu0 0.0
        %953 = vmatpush1.xpose.msra.mxu0 0.0
        %954 = vmatprep.subr.mxu0 0.0
        %955 = vmatpush1.xpose.msra.mxu0 %v922
        %956 = vmatprep.subr.mxu0 0.0
        %957 = vmatpush2.xpose.msra.mxu0 0.0
        %958 = vmatprep.subr.mxu0 0.0
        %959 = vmatpush2.xpose.msra.mxu0 0.0
        %960 = vmatprep.subr.mxu0 0.0
        %961 = vmatpush2.xpose.msra.mxu0 0.0
        %962 = vmatprep.subr.mxu0 0.0
        %963 = vmatpush2.xpose.msra.mxu0 0.0
        %964 = vmatprep.subr.mxu0 0.0
        %965 = vmatpush2.xpose.msra.mxu0 0.0
        %966 = vmatprep.subr.mxu0 0.0
        %967 = vmatpush2.xpose.msra.mxu0 0.0
        %968 = vmatprep.subr.mxu0 0.0
        %969 = vmatpush2.xpose.msra.mxu0 0.0
        %970 = vmatprep.subr.mxu0 0.0
        %971 = vmatpush2.xpose.msra.mxu0 0.0
        %972 = vmatprep.subr.mxu0 0.0
        %973 = vmatpush2.xpose.msra.mxu0 0.0
        %974 = vmatprep.subr.mxu0 0.0
        %975 = vmatpush2.xpose.msra.mxu0 0.0
        %976 = vmatprep.subr.mxu0 0.0
        %977 = vmatpush2.xpose.msra.mxu0 0.0
        %978 = vmatprep.subr.mxu0 0.0
        %979 = vmatpush2.xpose.msra.mxu0 0.0
        %980 = vmatprep.subr.mxu0 0.0
        %981 = vmatpush2.xpose.msra.mxu0 0.0
        %982 = vmatprep.subr.mxu0 0.0
        %983 = vmatpush2.xpose.msra.mxu0 0.0
        %984 = vmatprep.subr.mxu0 0.0
        %985 = vmatpush2.xpose.msra.mxu0 0.0
        %986 = vmatprep.subr.mxu0 0.0
        %987 = vmatpush2.xpose.msra.mxu0 0.0
        %988 = vmatprep.mubr.f32.mxu0 0.0
        %989 = vmatmul.mubr.f32.gmra.mxu0 %v920
        %v990 = vpop.f32.mrf.mxu0
        %v991 = vadd.f32 0.0, %v990
        %v992 = vpop.f32.mrf.mxu0
        %993 = vdwg.mxu0
        %994 = vrot.lane.b32.xlu0 %v838, 96
        %v995 = vpop.permute.xlu0 %994
        %v996 = vsel %vm843, %v838, 0
        %v998 = vsel %vm843, %v995, 0
        %1000 = vmatprep.subr.mxu0 0.0
        %1001 = vmatpush1.xpose.msra.mxu0 0.0
        %1002 = vmatprep.subr.mxu0 0.0
        %1003 = vmatpush1.xpose.msra.mxu0 0.0
        %1004 = vmatprep.subr.mxu0 0.0
        %1005 = vmatpush1.xpose.msra.mxu0 0.0
        %1006 = vmatprep.subr.mxu0 0.0
        %1007 = vmatpush1.xpose.msra.mxu0 0.0
        %1008 = vmatprep.subr.mxu0 0.0
        %1009 = vmatpush1.xpose.msra.mxu0 0.0
        %1010 = vmatprep.subr.mxu0 0.0
        %1011 = vmatpush1.xpose.msra.mxu0 0.0
        %1012 = vmatprep.subr.mxu0 0.0
        %1013 = vmatpush1.xpose.msra.mxu0 0.0
        %1014 = vmatprep.subr.mxu0 0.0
        %1015 = vmatpush1.xpose.msra.mxu0 0.0
        %1016 = vmatprep.subr.mxu0 0.0
        %1017 = vmatpush1.xpose.msra.mxu0 0.0
        %1018 = vmatprep.subr.mxu0 0.0
        %1019 = vmatpush1.xpose.msra.mxu0 0.0
        %1020 = vmatprep.subr.mxu0 0.0
        %1021 = vmatpush1.xpose.msra.mxu0 0.0
        %1022 = vmatprep.subr.mxu0 0.0
        %1023 = vmatpush1.xpose.msra.mxu0 0.0
        %1024 = vmatprep.subr.mxu0 0.0
        %1025 = vmatpush1.xpose.msra.mxu0 0.0
        %1026 = vmatprep.subr.mxu0 0.0
        %1027 = vmatpush1.xpose.msra.mxu0 0.0
        %1028 = vmatprep.subr.mxu0 0.0
        %1029 = vmatpush1.xpose.msra.mxu0 0.0
        %1030 = vmatprep.subr.mxu0 0.0
        %1031 = vmatpush1.xpose.msra.mxu0 %v998
        %1032 = vmatprep.subr.mxu0 0.0
        %1033 = vmatpush2.xpose.msra.mxu0 0.0
        %1034 = vmatprep.subr.mxu0 0.0
        %1035 = vmatpush2.xpose.msra.mxu0 0.0
        %1036 = vmatprep.subr.mxu0 0.0
        %1037 = vmatpush2.xpose.msra.mxu0 0.0
        %1038 = vmatprep.subr.mxu0 0.0
        %1039 = vmatpush2.xpose.msra.mxu0 0.0
        %1040 = vmatprep.subr.mxu0 0.0
        %1041 = vmatpush2.xpose.msra.mxu0 0.0
        %1042 = vmatprep.subr.mxu0 0.0
        %1043 = vmatpush2.xpose.msra.mxu0 0.0
        %1044 = vmatprep.subr.mxu0 0.0
        %1045 = vmatpush2.xpose.msra.mxu0 0.0
        %1046 = vmatprep.subr.mxu0 0.0
        %1047 = vmatpush2.xpose.msra.mxu0 0.0
        %1048 = vmatprep.subr.mxu0 0.0
        %1049 = vmatpush2.xpose.msra.mxu0 0.0
        %1050 = vmatprep.subr.mxu0 0.0
        %1051 = vmatpush2.xpose.msra.mxu0 0.0
        %1052 = vmatprep.subr.mxu0 0.0
        %1053 = vmatpush2.xpose.msra.mxu0 0.0
        %1054 = vmatprep.subr.mxu0 0.0
        %1055 = vmatpush2.xpose.msra.mxu0 0.0
        %1056 = vmatprep.subr.mxu0 0.0
        %1057 = vmatpush2.xpose.msra.mxu0 0.0
        %1058 = vmatprep.subr.mxu0 0.0
        %1059 = vmatpush2.xpose.msra.mxu0 0.0
        %1060 = vmatprep.subr.mxu0 0.0
        %1061 = vmatpush2.xpose.msra.mxu0 0.0
        %1062 = vmatprep.subr.mxu0 0.0
        %1063 = vmatpush2.xpose.msra.mxu0 0.0
        %1064 = vmatprep.mubr.f32.mxu0 0.0
        %1065 = vmatmul.mubr.f32.gmra.mxu0 %v996
        %v1066 = vpop.f32.mrf.mxu0
        %v1067 = vadd.f32 0.0, %v1066
        %v1068 = vpop.f32.mrf.mxu0
        %1069 = vdwg.mxu0
        %1070 = vrot.lane.b32.xlu0 %v840, 96
        %v1071 = vpop.permute.xlu0 %1070
        %v1072 = vsel %vm843, %v840, 0
        %v1074 = vsel %vm843, %v1071, 0
        %1076 = vmatprep.subr.mxu0 0.0
        %1077 = vmatpush1.xpose.msra.mxu0 0.0
        %1078 = vmatprep.subr.mxu0 0.0
        %1079 = vmatpush1.xpose.msra.mxu0 0.0
        %1080 = vmatprep.subr.mxu0 0.0
        %1081 = vmatpush1.xpose.msra.mxu0 0.0
        %1082 = vmatprep.subr.mxu0 0.0
        %1083 = vmatpush1.xpose.msra.mxu0 0.0
        %1084 = vmatprep.subr.mxu0 0.0
        %1085 = vmatpush1.xpose.msra.mxu0 0.0
        %1086 = vmatprep.subr.mxu0 0.0
        %1087 = vmatpush1.xpose.msra.mxu0 0.0
        %1088 = vmatprep.subr.mxu0 0.0
        %1089 = vmatpush1.xpose.msra.mxu0 0.0
        %1090 = vmatprep.subr.mxu0 0.0
        %1091 = vmatpush1.xpose.msra.mxu0 0.0
        %1092 = vmatprep.subr.mxu0 0.0
        %1093 = vmatpush1.xpose.msra.mxu0 0.0
        %1094 = vmatprep.subr.mxu0 0.0
        %1095 = vmatpush1.xpose.msra.mxu0 0.0
        %1096 = vmatprep.subr.mxu0 0.0
        %1097 = vmatpush1.xpose.msra.mxu0 0.0
        %1098 = vmatprep.subr.mxu0 0.0
        %1099 = vmatpush1.xpose.msra.mxu0 0.0
        %1100 = vmatprep.subr.mxu0 0.0
        %1101 = vmatpush1.xpose.msra.mxu0 0.0
        %1102 = vmatprep.subr.mxu0 0.0
        %1103 = vmatpush1.xpose.msra.mxu0 0.0
        %1104 = vmatprep.subr.mxu0 0.0
        %1105 = vmatpush1.xpose.msra.mxu0 0.0
        %1106 = vmatprep.subr.mxu0 0.0
        %1107 = vmatpush1.xpose.msra.mxu0 %v1074
        %1108 = vmatprep.subr.mxu0 0.0
        %1109 = vmatpush2.xpose.msra.mxu0 0.0
        %1110 = vmatprep.subr.mxu0 0.0
        %1111 = vmatpush2.xpose.msra.mxu0 0.0
        %1112 = vmatprep.subr.mxu0 0.0
        %1113 = vmatpush2.xpose.msra.mxu0 0.0
        %1114 = vmatprep.subr.mxu0 0.0
        %1115 = vmatpush2.xpose.msra.mxu0 0.0
        %1116 = vmatprep.subr.mxu0 0.0
        %1117 = vmatpush2.xpose.msra.mxu0 0.0
        %1118 = vmatprep.subr.mxu0 0.0
        %1119 = vmatpush2.xpose.msra.mxu0 0.0
        %1120 = vmatprep.subr.mxu0 0.0
        %1121 = vmatpush2.xpose.msra.mxu0 0.0
        %1122 = vmatprep.subr.mxu0 0.0
        %1123 = vmatpush2.xpose.msra.mxu0 0.0
        %1124 = vmatprep.subr.mxu0 0.0
        %1125 = vmatpush2.xpose.msra.mxu0 0.0
        %1126 = vmatprep.subr.mxu0 0.0
        %1127 = vmatpush2.xpose.msra.mxu0 0.0
        %1128 = vmatprep.subr.mxu0 0.0
        %1129 = vmatpush2.xpose.msra.mxu0 0.0
        %1130 = vmatprep.subr.mxu0 0.0
        %1131 = vmatpush2.xpose.msra.mxu0 0.0
        %1132 = vmatprep.subr.mxu0 0.0
        %1133 = vmatpush2.xpose.msra.mxu0 0.0
        %1134 = vmatprep.subr.mxu0 0.0
        %1135 = vmatpush2.xpose.msra.mxu0 0.0
        %1136 = vmatprep.subr.mxu0 0.0
        %1137 = vmatpush2.xpose.msra.mxu0 0.0
        %1138 = vmatprep.subr.mxu0 0.0
        %1139 = vmatpush2.xpose.msra.mxu0 0.0
        %1140 = vmatprep.mubr.f32.mxu0 0.0
        %1141 = vmatmul.mubr.f32.gmra.mxu0 %v1072
        %v1142 = vpop.f32.mrf.mxu0
        %v1143 = vadd.f32 0.0, %v1142
        %v1144 = vpop.f32.mrf.mxu0
        %1145 = vdwg.mxu0
        %v1146 = vsel %vm843, %v915, -inf
        %1147 = vmax.xlane.f32.xlu0 %v1146
        %v1148 = vpop.xlane.xlu0 %1147
        %v1149 = vsel %vm843, %v991, -inf
        %1150 = vmax.xlane.f32.xlu0 %v1149
        %v1151 = vpop.xlane.xlu0 %1150
        %v1152 = vsel %vm843, %v1067, -inf
        %1153 = vmax.xlane.f32.xlu0 %v1152
        %v1154 = vpop.xlane.xlu0 %1153
        %v1155 = vsel %vm843, %v1143, -inf
        %1156 = vmax.xlane.f32.xlu0 %v1155
        %v1157 = vpop.xlane.xlu0 %1156
        %v1158 = vsub.f32 %v915, %v1148
        %v1159 = vsub.f32 %v991, %v1151
        %v1160 = vsub.f32 %v1067, %v1154
        %v1161 = vsub.f32 %v1143, %v1157
        %v1162 = vmul.f32 %v1158, 1.442695
        %v1163 = vpow.pop %v1162
        %v1164 = vmul.f32 %v1159, 1.442695
        %v1165 = vpow.pop %v1164
        %v1166 = vmul.f32 %v1160, 1.442695
        %v1167 = vpow.pop %v1166
        %v1168 = vmul.f32 %v1161, 1.442695
        %v1169 = vpow.pop %v1168
        %v1170 = vsel %vm843, %v1163, 0.0
        %1171 = vadd.xlane.f32.xlu0 %v1170
        %v1172 = vpop.xlane.xlu0 %1171
        %v1173 = vsel %vm843, %v1165, 0.0
        %1174 = vadd.xlane.f32.xlu0 %v1173
        %v1175 = vpop.xlane.xlu0 %1174
        %v1176 = vsel %vm843, %v1167, 0.0
        %1177 = vadd.xlane.f32.xlu0 %v1176
        %v1178 = vpop.xlane.xlu0 %1177
        %v1179 = vsel %vm843, %v1169, 0.0
        %1180 = vadd.xlane.f32.xlu0 %v1179
        %v1181 = vpop.xlane.xlu0 %1180
        %v1182 = vrcp.pop %v1172
        %v1183 = vrcp.pop %v1175
        %v1184 = vrcp.pop %v1178
        %v1185 = vrcp.pop %v1181
        %v1186 = vmul.f32 %v1163, %v1182
        %v1187 = vmul.f32 %v1165, %v1183
        %v1188 = vmul.f32 %v1167, %v1184
        %v1189 = vmul.f32 %v1169, %v1185
        %1190 = vrot.lane.b32.xlu0 %v831, 64
        %v1191 = vpop.permute.xlu0 %1190
        %v1194 = vsel %vm843, %v1186, 0
        %1196 = vmatprep.subr.mxu0 0.0
        %1197 = vmatpush1.msra.mxu0 0.0
        %1198 = vmatprep.subr.mxu0 0.0
        %1199 = vmatpush1.msra.mxu0 0.0
        %1200 = vmatprep.subr.mxu0 0.0
        %1201 = vmatpush1.msra.mxu0 0.0
        %1202 = vmatprep.subr.mxu0 0.0
        %1203 = vmatpush1.msra.mxu0 0.0
        %1204 = vmatprep.subr.mxu0 0.0
        %1205 = vmatpush1.msra.mxu0 0.0
        %1206 = vmatprep.subr.mxu0 0.0
        %1207 = vmatpush1.msra.mxu0 0.0
        %1208 = vmatprep.subr.mxu0 0.0
        %1209 = vmatpush1.msra.mxu0 0.0
        %1210 = vmatprep.subr.mxu0 0.0
        %1211 = vmatpush1.msra.mxu0 0.0
        %1212 = vmatprep.subr.mxu0 0.0
        %1213 = vmatpush1.msra.mxu0 0.0
        %1214 = vmatprep.subr.mxu0 0.0
        %1215 = vmatpush1.msra.mxu0 0.0
        %1216 = vmatprep.subr.mxu0 0.0
        %1217 = vmatpush1.msra.mxu0 0.0
        %1218 = vmatprep.subr.mxu0 0.0
        %1219 = vmatpush1.msra.mxu0 0.0
        %1220 = vmatprep.subr.mxu0 0.0
        %1221 = vmatpush1.msra.mxu0 0.0
        %1222 = vmatprep.subr.mxu0 0.0
        %1223 = vmatpush1.msra.mxu0 0.0
        %1224 = vmatprep.subr.mxu0 0.0
        %1225 = vmatpush1.msra.mxu0 0.0
        %1226 = vmatprep.subr.mxu0 0.0
        %1227 = vmatpush1.msra.mxu0 %v1191
        %1228 = vmatprep.subr.mxu0 0.0
        %1229 = vmatpush2.msra.mxu0 0.0
        %1230 = vmatprep.subr.mxu0 0.0
        %1231 = vmatpush2.msra.mxu0 0.0
        %1232 = vmatprep.subr.mxu0 0.0
        %1233 = vmatpush2.msra.mxu0 0.0
        %1234 = vmatprep.subr.mxu0 0.0
        %1235 = vmatpush2.msra.mxu0 0.0
        %1236 = vmatprep.subr.mxu0 0.0
        %1237 = vmatpush2.msra.mxu0 0.0
        %1238 = vmatprep.subr.mxu0 0.0
        %1239 = vmatpush2.msra.mxu0 0.0
        %1240 = vmatprep.subr.mxu0 0.0
        %1241 = vmatpush2.msra.mxu0 0.0
        %1242 = vmatprep.subr.mxu0 0.0
        %1243 = vmatpush2.msra.mxu0 0.0
        %1244 = vmatprep.subr.mxu0 0.0
        %1245 = vmatpush2.msra.mxu0 0.0
        %1246 = vmatprep.subr.mxu0 0.0
        %1247 = vmatpush2.msra.mxu0 0.0
        %1248 = vmatprep.subr.mxu0 0.0
        %1249 = vmatpush2.msra.mxu0 0.0
        %1250 = vmatprep.subr.mxu0 0.0
        %1251 = vmatpush2.msra.mxu0 0.0
        %1252 = vmatprep.subr.mxu0 0.0
        %1253 = vmatpush2.msra.mxu0 0.0
        %1254 = vmatprep.subr.mxu0 0.0
        %1255 = vmatpush2.msra.mxu0 0.0
        %1256 = vmatprep.subr.mxu0 0.0
        %1257 = vmatpush2.msra.mxu0 0.0
        %1258 = vmatprep.subr.mxu0 0.0
        %1259 = vmatpush2.msra.mxu0 0.0
        %1260 = vmatprep.mubr.f32.mxu0 0.0
        %1261 = vmatmul.mubr.f32.gmra.mxu0 %v1194
        %v1262 = vpop.f32.mrf.mxu0
        %v1263 = vadd.f32 0.0, %v1262
        %v1264 = vpop.f32.mrf.mxu0
        %1265 = vdwg.mxu0
        %1266 = vrot.lane.b32.xlu0 %v836, 64
        %v1267 = vpop.permute.xlu0 %1266
        %v1270 = vsel %vm843, %v1187, 0
        %1272 = vmatprep.subr.mxu0 0.0
        %1273 = vmatpush1.msra.mxu0 0.0
        %1274 = vmatprep.subr.mxu0 0.0
        %1275 = vmatpush1.msra.mxu0 0.0
        %1276 = vmatprep.subr.mxu0 0.0
        %1277 = vmatpush1.msra.mxu0 0.0
        %1278 = vmatprep.subr.mxu0 0.0
        %1279 = vmatpush1.msra.mxu0 0.0
        %1280 = vmatprep.subr.mxu0 0.0
        %1281 = vmatpush1.msra.mxu0 0.0
        %1282 = vmatprep.subr.mxu0 0.0
        %1283 = vmatpush1.msra.mxu0 0.0
        %1284 = vmatprep.subr.mxu0 0.0
        %1285 = vmatpush1.msra.mxu0 0.0
        %1286 = vmatprep.subr.mxu0 0.0
        %1287 = vmatpush1.msra.mxu0 0.0
        %1288 = vmatprep.subr.mxu0 0.0
        %1289 = vmatpush1.msra.mxu0 0.0
        %1290 = vmatprep.subr.mxu0 0.0
        %1291 = vmatpush1.msra.mxu0 0.0
        %1292 = vmatprep.subr.mxu0 0.0
        %1293 = vmatpush1.msra.mxu0 0.0
        %1294 = vmatprep.subr.mxu0 0.0
        %1295 = vmatpush1.msra.mxu0 0.0
        %1296 = vmatprep.subr.mxu0 0.0
        %1297 = vmatpush1.msra.mxu0 0.0
        %1298 = vmatprep.subr.mxu0 0.0
        %1299 = vmatpush1.msra.mxu0 0.0
        %1300 = vmatprep.subr.mxu0 0.0
        %1301 = vmatpush1.msra.mxu0 0.0
        %1302 = vmatprep.subr.mxu0 0.0
        %1303 = vmatpush1.msra.mxu0 %v1267
        %1304 = vmatprep.subr.mxu0 0.0
        %1305 = vmatpush2.msra.mxu0 0.0
        %1306 = vmatprep.subr.mxu0 0.0
        %1307 = vmatpush2.msra.mxu0 0.0
        %1308 = vmatprep.subr.mxu0 0.0
        %1309 = vmatpush2.msra.mxu0 0.0
        %1310 = vmatprep.subr.mxu0 0.0
        %1311 = vmatpush2.msra.mxu0 0.0
        %1312 = vmatprep.subr.mxu0 0.0
        %1313 = vmatpush2.msra.mxu0 0.0
        %1314 = vmatprep.subr.mxu0 0.0
        %1315 = vmatpush2.msra.mxu0 0.0
        %1316 = vmatprep.subr.mxu0 0.0
        %1317 = vmatpush2.msra.mxu0 0.0
        %1318 = vmatprep.subr.mxu0 0.0
        %1319 = vmatpush2.msra.mxu0 0.0
        %1320 = vmatprep.subr.mxu0 0.0
        %1321 = vmatpush2.msra.mxu0 0.0
        %1322 = vmatprep.subr.mxu0 0.0
        %1323 = vmatpush2.msra.mxu0 0.0
        %1324 = vmatprep.subr.mxu0 0.0
        %1325 = vmatpush2.msra.mxu0 0.0
        %1326 = vmatprep.subr.mxu0 0.0
        %1327 = vmatpush2.msra.mxu0 0.0
        %1328 = vmatprep.subr.mxu0 0.0
        %1329 = vmatpush2.msra.mxu0 0.0
        %1330 = vmatprep.subr.mxu0 0.0
        %1331 = vmatpush2.msra.mxu0 0.0
        %1332 = vmatprep.subr.mxu0 0.0
        %1333 = vmatpush2.msra.mxu0 0.0
        %1334 = vmatprep.subr.mxu0 0.0
        %1335 = vmatpush2.msra.mxu0 0.0
        %1336 = vmatprep.mubr.f32.mxu0 0.0
        %1337 = vmatmul.mubr.f32.gmra.mxu0 %v1270
        %v1338 = vpop.f32.mrf.mxu0
        %v1339 = vadd.f32 0.0, %v1338
        %v1340 = vpop.f32.mrf.mxu0
        %1341 = vdwg.mxu0
        %1342 = vrot.lane.b32.xlu0 %v838, 64
        %v1343 = vpop.permute.xlu0 %1342
        %v1346 = vsel %vm843, %v1188, 0
        %1348 = vmatprep.subr.mxu0 0.0
        %1349 = vmatpush1.msra.mxu0 0.0
        %1350 = vmatprep.subr.mxu0 0.0
        %1351 = vmatpush1.msra.mxu0 0.0
        %1352 = vmatprep.subr.mxu0 0.0
        %1353 = vmatpush1.msra.mxu0 0.0
        %1354 = vmatprep.subr.mxu0 0.0
        %1355 = vmatpush1.msra.mxu0 0.0
        %1356 = vmatprep.subr.mxu0 0.0
        %1357 = vmatpush1.msra.mxu0 0.0
        %1358 = vmatprep.subr.mxu0 0.0
        %1359 = vmatpush1.msra.mxu0 0.0
        %1360 = vmatprep.subr.mxu0 0.0
        %1361 = vmatpush1.msra.mxu0 0.0
        %1362 = vmatprep.subr.mxu0 0.0
        %1363 = vmatpush1.msra.mxu0 0.0
        %1364 = vmatprep.subr.mxu0 0.0
        %1365 = vmatpush1.msra.mxu0 0.0
        %1366 = vmatprep.subr.mxu0 0.0
        %1367 = vmatpush1.msra.mxu0 0.0
        %1368 = vmatprep.subr.mxu0 0.0
        %1369 = vmatpush1.msra.mxu0 0.0
        %1370 = vmatprep.subr.mxu0 0.0
        %1371 = vmatpush1.msra.mxu0 0.0
        %1372 = vmatprep.subr.mxu0 0.0
        %1373 = vmatpush1.msra.mxu0 0.0
        %1374 = vmatprep.subr.mxu0 0.0
        %1375 = vmatpush1.msra.mxu0 0.0
        %1376 = vmatprep.subr.mxu0 0.0
        %1377 = vmatpush1.msra.mxu0 0.0
        %1378 = vmatprep.subr.mxu0 0.0
        %1379 = vmatpush1.msra.mxu0 %v1343
        %1380 = vmatprep.subr.mxu0 0.0
        %1381 = vmatpush2.msra.mxu0 0.0
        %1382 = vmatprep.subr.mxu0 0.0
        %1383 = vmatpush2.msra.mxu0 0.0
        %1384 = vmatprep.subr.mxu0 0.0
        %1385 = vmatpush2.msra.mxu0 0.0
        %1386 = vmatprep.subr.mxu0 0.0
        %1387 = vmatpush2.msra.mxu0 0.0
        %1388 = vmatprep.subr.mxu0 0.0
        %1389 = vmatpush2.msra.mxu0 0.0
        %1390 = vmatprep.subr.mxu0 0.0
        %1391 = vmatpush2.msra.mxu0 0.0
        %1392 = vmatprep.subr.mxu0 0.0
        %1393 = vmatpush2.msra.mxu0 0.0
        %1394 = vmatprep.subr.mxu0 0.0
        %1395 = vmatpush2.msra.mxu0 0.0
        %1396 = vmatprep.subr.mxu0 0.0
        %1397 = vmatpush2.msra.mxu0 0.0
        %1398 = vmatprep.subr.mxu0 0.0
        %1399 = vmatpush2.msra.mxu0 0.0
        %1400 = vmatprep.subr.mxu0 0.0
        %1401 = vmatpush2.msra.mxu0 0.0
        %1402 = vmatprep.subr.mxu0 0.0
        %1403 = vmatpush2.msra.mxu0 0.0
        %1404 = vmatprep.subr.mxu0 0.0
        %1405 = vmatpush2.msra.mxu0 0.0
        %1406 = vmatprep.subr.mxu0 0.0
        %1407 = vmatpush2.msra.mxu0 0.0
        %1408 = vmatprep.subr.mxu0 0.0
        %1409 = vmatpush2.msra.mxu0 0.0
        %1410 = vmatprep.subr.mxu0 0.0
        %1411 = vmatpush2.msra.mxu0 0.0
        %1412 = vmatprep.mubr.f32.mxu0 0.0
        %1413 = vmatmul.mubr.f32.gmra.mxu0 %v1346
        %v1414 = vpop.f32.mrf.mxu0
        %v1415 = vadd.f32 0.0, %v1414
        %v1416 = vpop.f32.mrf.mxu0
        %1417 = vdwg.mxu0
        %1418 = vrot.lane.b32.xlu0 %v840, 64
        %v1419 = vpop.permute.xlu0 %1418
        %v1422 = vsel %vm843, %v1189, 0
        %1424 = vmatprep.subr.mxu0 0.0
        %1425 = vmatpush1.msra.mxu0 0.0
        %1426 = vmatprep.subr.mxu0 0.0
        %1427 = vmatpush1.msra.mxu0 0.0
        %1428 = vmatprep.subr.mxu0 0.0
        %1429 = vmatpush1.msra.mxu0 0.0
        %1430 = vmatprep.subr.mxu0 0.0
        %1431 = vmatpush1.msra.mxu0 0.0
        %1432 = vmatprep.subr.mxu0 0.0
        %1433 = vmatpush1.msra.mxu0 0.0
        %1434 = vmatprep.subr.mxu0 0.0
        %1435 = vmatpush1.msra.mxu0 0.0
        %1436 = vmatprep.subr.mxu0 0.0
        %1437 = vmatpush1.msra.mxu0 0.0
        %1438 = vmatprep.subr.mxu0 0.0
        %1439 = vmatpush1.msra.mxu0 0.0
        %1440 = vmatprep.subr.mxu0 0.0
        %1441 = vmatpush1.msra.mxu0 0.0
        %1442 = vmatprep.subr.mxu0 0.0
        %1443 = vmatpush1.msra.mxu0 0.0
        %1444 = vmatprep.subr.mxu0 0.0
        %1445 = vmatpush1.msra.mxu0 0.0
        %1446 = vmatprep.subr.mxu0 0.0
        %1447 = vmatpush1.msra.mxu0 0.0
        %1448 = vmatprep.subr.mxu0 0.0
        %1449 = vmatpush1.msra.mxu0 0.0
        %1450 = vmatprep.subr.mxu0 0.0
        %1451 = vmatpush1.msra.mxu0 0.0
        %1452 = vmatprep.subr.mxu0 0.0
        %1453 = vmatpush1.msra.mxu0 0.0
        %1454 = vmatprep.subr.mxu0 0.0
        %1455 = vmatpush1.msra.mxu0 %v1419
        %1456 = vmatprep.subr.mxu0 0.0
        %1457 = vmatpush2.msra.mxu0 0.0
        %1458 = vmatprep.subr.mxu0 0.0
        %1459 = vmatpush2.msra.mxu0 0.0
        %1460 = vmatprep.subr.mxu0 0.0
        %1461 = vmatpush2.msra.mxu0 0.0
        %1462 = vmatprep.subr.mxu0 0.0
        %1463 = vmatpush2.msra.mxu0 0.0
        %1464 = vmatprep.subr.mxu0 0.0
        %1465 = vmatpush2.msra.mxu0 0.0
        %1466 = vmatprep.subr.mxu0 0.0
        %1467 = vmatpush2.msra.mxu0 0.0
        %1468 = vmatprep.subr.mxu0 0.0
        %1469 = vmatpush2.msra.mxu0 0.0
        %1470 = vmatprep.subr.mxu0 0.0
        %1471 = vmatpush2.msra.mxu0 0.0
        %1472 = vmatprep.subr.mxu0 0.0
        %1473 = vmatpush2.msra.mxu0 0.0
        %1474 = vmatprep.subr.mxu0 0.0
        %1475 = vmatpush2.msra.mxu0 0.0
        %1476 = vmatprep.subr.mxu0 0.0
        %1477 = vmatpush2.msra.mxu0 0.0
        %1478 = vmatprep.subr.mxu0 0.0
        %1479 = vmatpush2.msra.mxu0 0.0
        %1480 = vmatprep.subr.mxu0 0.0
        %1481 = vmatpush2.msra.mxu0 0.0
        %1482 = vmatprep.subr.mxu0 0.0
        %1483 = vmatpush2.msra.mxu0 0.0
        %1484 = vmatprep.subr.mxu0 0.0
        %1485 = vmatpush2.msra.mxu0 0.0
        %1486 = vmatprep.subr.mxu0 0.0
        %1487 = vmatpush2.msra.mxu0 0.0
        %1488 = vmatprep.mubr.f32.mxu0 0.0
        %1489 = vmatmul.mubr.f32.gmra.mxu0 %v1422
        %v1490 = vpop.f32.mrf.mxu0
        %v1491 = vadd.f32 0.0, %v1490
        %v1492 = vpop.f32.mrf.mxu0
        %1493 = vdwg.mxu0
        %1495 = vrot.lane.b32.xlu0 %v1339, 8
        %v1496 = vpop.permute.xlu0 %1495
        %1499 = vrot.lane.b32.xlu0 %v1415, 16
        %v1500 = vpop.permute.xlu0 %1499
        %1503 = vrot.lane.b32.xlu0 %v1491, 24
        %v1504 = vpop.permute.xlu0 %1503
        %v1506 = vsel %vm843, %v1263, %v1496
        %vm1507 = vcmask 130048
        %v1508 = vsel %vm1507, %v1506, %v1500
        %vm1509 = vcmask 195584
        %v1510 = vsel %vm1509, %v1508, %v1504
        %v1511 = vld [vmem:[%s709] sm:$0xff]
        %v1512 = vld [vmem:[%s709 + $0x8] sm:$0xff]
        %v1513 = vld [vmem:[%s709 + $0x10] sm:$0xff]
        %v1514 = vld [vmem:[%s709 + $0x18] sm:$0xff]
        %v1515 = vld [vmem:[%s712] sm:$0x1]
        %v1517 = vlaneseq
        %v1518 = vshrl.u32 %v1517, 7
        %v1519 = vsub.s32 0, %v1518
        %v1520 = vrot.slane %v1515, %v1519
        %v1523 = vsel %vm760, %v1510, 0
        %1525 = vmatprep.subr.mxu0 0.0
        %1526 = vmatpush1.msra.mxu0 0.0
        %1527 = vmatprep.subr.mxu0 0.0
        %1528 = vmatpush1.msra.mxu0 0.0
        %1529 = vmatprep.subr.mxu0 0.0
        %1530 = vmatpush1.msra.mxu0 0.0
        %1531 = vmatprep.subr.mxu0 0.0
        %1532 = vmatpush1.msra.mxu0 0.0
        %1533 = vmatprep.subr.mxu0 0.0
        %1534 = vmatpush1.msra.mxu0 0.0
        %1535 = vmatprep.subr.mxu0 0.0
        %1536 = vmatpush1.msra.mxu0 0.0
        %1537 = vmatprep.subr.mxu0 0.0
        %1538 = vmatpush1.msra.mxu0 0.0
        %1539 = vmatprep.subr.mxu0 0.0
        %1540 = vmatpush1.msra.mxu0 0.0
        %1541 = vmatprep.subr.mxu0 0.0
        %1542 = vmatpush1.msra.mxu0 0.0
        %1543 = vmatprep.subr.mxu0 0.0
        %1544 = vmatpush1.msra.mxu0 0.0
        %1545 = vmatprep.subr.mxu0 0.0
        %1546 = vmatpush1.msra.mxu0 0.0
        %1547 = vmatprep.subr.mxu0 0.0
        %1548 = vmatpush1.msra.mxu0 0.0
        %1549 = vmatprep.subr.mxu0 0.0
        %1550 = vmatpush1.msra.mxu0 %v1514
        %1551 = vmatprep.subr.mxu0 0.0
        %1552 = vmatpush1.msra.mxu0 %v1513
        %1553 = vmatprep.subr.mxu0 0.0
        %1554 = vmatpush1.msra.mxu0 %v1512
        %1555 = vmatprep.subr.mxu0 0.0
        %1556 = vmatpush1.msra.mxu0 %v1511
        %1557 = vmatprep.subr.mxu0 0.0
        %1558 = vmatpush2.msra.mxu0 0.0
        %1559 = vmatprep.subr.mxu0 0.0
        %1560 = vmatpush2.msra.mxu0 0.0
        %1561 = vmatprep.subr.mxu0 0.0
        %1562 = vmatpush2.msra.mxu0 0.0
        %1563 = vmatprep.subr.mxu0 0.0
        %1564 = vmatpush2.msra.mxu0 0.0
        %1565 = vmatprep.subr.mxu0 0.0
        %1566 = vmatpush2.msra.mxu0 0.0
        %1567 = vmatprep.subr.mxu0 0.0
        %1568 = vmatpush2.msra.mxu0 0.0
        %1569 = vmatprep.subr.mxu0 0.0
        %1570 = vmatpush2.msra.mxu0 0.0
        %1571 = vmatprep.subr.mxu0 0.0
        %1572 = vmatpush2.msra.mxu0 0.0
        %1573 = vmatprep.subr.mxu0 0.0
        %1574 = vmatpush2.msra.mxu0 0.0
        %1575 = vmatprep.subr.mxu0 0.0
        %1576 = vmatpush2.msra.mxu0 0.0
        %1577 = vmatprep.subr.mxu0 0.0
        %1578 = vmatpush2.msra.mxu0 0.0
        %1579 = vmatprep.subr.mxu0 0.0
        %1580 = vmatpush2.msra.mxu0 0.0
        %1581 = vmatprep.subr.mxu0 0.0
        %1582 = vmatpush2.msra.mxu0 0.0
        %1583 = vmatprep.subr.mxu0 0.0
        %1584 = vmatpush2.msra.mxu0 0.0
        %1585 = vmatprep.subr.mxu0 0.0
        %1586 = vmatpush2.msra.mxu0 0.0
        %1587 = vmatprep.subr.mxu0 0.0
        %1588 = vmatpush2.msra.mxu0 0.0
        %1589 = vmatprep.mubr.f32.mxu0 0.0
        %1590 = vmatmul.mubr.f32.gmra.mxu0 %v1523
        %v1591 = vpop.f32.mrf.mxu0
        %v1592 = vadd.f32 %v1520, %v1591
        %v1593 = vpop.f32.mrf.mxu0
        %1594 = vdwg.mxu0
        %v1595 = vadd.f32 %v748, %v1592
        %v1596 = vld [vmem:[%s715] sm:$0x1]
        %v1597 = vld [vmem:[%s718] sm:$0x1]
        %v1598 = vsel %vm760, %v1595, 0.0
        %1599 = vadd.xlane.f32.xlu0 %v1598
        %v1600 = vpop.xlane.xlu0 %1599
        %v1601 = vrcp.pop 32.0
        %v1602 = vmul.f32 %v1600, %v1601
        %v1603 = vsub.f32 %v1595, %v1602
        %v1604 = vmul.f32 %v1603, %v1603
        %v1605 = vsel %vm760, %v1604, 0.0
        %1606 = vadd.xlane.f32.xlu0 %v1605
        %v1607 = vpop.xlane.xlu0 %1606
        %v1608 = vmul.f32 %v1607, %v1601
        %v1609 = vadd.f32 %v1608, 1e-05
        %v1610 = vrsqrt.pop %v1609
        %v1611 = vmul.f32 %v1603, %v1610
        %v1613 = vlaneseq
        %v1614 = vshrl.u32 %v1613, 7
        %v1615 = vsub.s32 0, %v1614
        %v1616 = vrot.slane %v1596, %v1615
        %v1618 = vmul.f32 %v1611, %v1616
        %v1620 = vlaneseq
        %v1621 = vshrl.u32 %v1620, 7
        %v1622 = vsub.s32 0, %v1621
        %v1623 = vrot.slane %v1597, %v1622
        %v1625 = vadd.f32 %v1618, %v1623
        %v1626 = vld [vmem:[%s729] sm:$0xff]
        %v1627 = vld [vmem:[%s729 + $0x8] sm:$0xff]
        %v1628 = vld [vmem:[%s729 + $0x10] sm:$0xff]
        %v1629 = vld [vmem:[%s729 + $0x18] sm:$0xff]
        %v1630 = vld [vmem:[%s732] sm:$0x1]
        %v1632 = vlaneseq
        %v1633 = vshrl.u32 %v1632, 7
        %v1634 = vsub.s32 0, %v1633
        %v1635 = vrot.slane %v1630, %v1634
        %v1638 = vsel %vm760, %v1625, 0
        %1640 = vmatprep.subr.mxu0 0.0
        %1641 = vmatpush1.msra.mxu0 0.0
        %1642 = vmatprep.subr.mxu0 0.0
        %1643 = vmatpush1.msra.mxu0 0.0
        %1644 = vmatprep.subr.mxu0 0.0
        %1645 = vmatpush1.msra.mxu0 0.0
        %1646 = vmatprep.subr.mxu0 0.0
        %1647 = vmatpush1.msra.mxu0 0.0
        %1648 = vmatprep.subr.mxu0 0.0
        %1649 = vmatpush1.msra.mxu0 0.0
        %1650 = vmatprep.subr.mxu0 0.0
        %1651 = vmatpush1.msra.mxu0 0.0
        %1652 = vmatprep.subr.mxu0 0.0
        %1653 = vmatpush1.msra.mxu0 0.0
        %1654 = vmatprep.subr.mxu0 0.0
        %1655 = vmatpush1.msra.mxu0 0.0
        %1656 = vmatprep.subr.mxu0 0.0
        %1657 = vmatpush1.msra.mxu0 0.0
        %1658 = vmatprep.subr.mxu0 0.0
        %1659 = vmatpush1.msra.mxu0 0.0
        %1660 = vmatprep.subr.mxu0 0.0
        %1661 = vmatpush1.msra.mxu0 0.0
        %1662 = vmatprep.subr.mxu0 0.0
        %1663 = vmatpush1.msra.mxu0 0.0
        %1664 = vmatprep.subr.mxu0 0.0
        %1665 = vmatpush1.msra.mxu0 %v1629
        %1666 = vmatprep.subr.mxu0 0.0
        %1667 = vmatpush1.msra.mxu0 %v1628
        %1668 = vmatprep.subr.mxu0 0.0
        %1669 = vmatpush1.msra.mxu0 %v1627
        %1670 = vmatprep.subr.mxu0 0.0
        %1671 = vmatpush1.msra.mxu0 %v1626
        %1672 = vmatprep.subr.mxu0 0.0
        %1673 = vmatpush2.msra.mxu0 0.0
        %1674 = vmatprep.subr.mxu0 0.0
        %1675 = vmatpush2.msra.mxu0 0.0
        %1676 = vmatprep.subr.mxu0 0.0
        %1677 = vmatpush2.msra.mxu0 0.0
        %1678 = vmatprep.subr.mxu0 0.0
        %1679 = vmatpush2.msra.mxu0 0.0
        %1680 = vmatprep.subr.mxu0 0.0
        %1681 = vmatpush2.msra.mxu0 0.0
        %1682 = vmatprep.subr.mxu0 0.0
        %1683 = vmatpush2.msra.mxu0 0.0
        %1684 = vmatprep.subr.mxu0 0.0
        %1685 = vmatpush2.msra.mxu0 0.0
        %1686 = vmatprep.subr.mxu0 0.0
        %1687 = vmatpush2.msra.mxu0 0.0
        %1688 = vmatprep.subr.mxu0 0.0
        %1689 = vmatpush2.msra.mxu0 0.0
        %1690 = vmatprep.subr.mxu0 0.0
        %1691 = vmatpush2.msra.mxu0 0.0
        %1692 = vmatprep.subr.mxu0 0.0
        %1693 = vmatpush2.msra.mxu0 0.0
        %1694 = vmatprep.subr.mxu0 0.0
        %1695 = vmatpush2.msra.mxu0 0.0
        %1696 = vmatprep.subr.mxu0 0.0
        %1697 = vmatpush2.msra.mxu0 0.0
        %1698 = vmatprep.subr.mxu0 0.0
        %1699 = vmatpush2.msra.mxu0 0.0
        %1700 = vmatprep.subr.mxu0 0.0
        %1701 = vmatpush2.msra.mxu0 0.0
        %1702 = vmatprep.subr.mxu0 0.0
        %1703 = vmatpush2.msra.mxu0 0.0
        %1704 = vmatprep.mubr.f32.mxu0 0.0
        %1705 = vmatmul.mubr.f32.gmra.mxu0 %v1638
        %v1706 = vpop.f32.mrf.mxu0
        %v1707 = vadd.f32 %v1635, %v1706
        %v1708 = vpop.f32.mrf.mxu0
        %1709 = vdwg.mxu0
        %v1710 = vmax.f32 %v1707, 0.0
        %v1711 = vld [vmem:[%s737] sm:$0xff]
        %v1712 = vld [vmem:[%s737 + $0x8] sm:$0xff]
        %v1713 = vld [vmem:[%s737 + $0x10] sm:$0xff]
        %v1714 = vld [vmem:[%s737 + $0x18] sm:$0xff]
        %v1715 = vld [vmem:[%s737 + $0x20] sm:$0xff]
        %v1716 = vld [vmem:[%s737 + $0x28] sm:$0xff]
        %v1717 = vld [vmem:[%s737 + $0x30] sm:$0xff]
        %v1718 = vld [vmem:[%s737 + $0x38] sm:$0xff]
        %v1719 = vld [vmem:[%s740] sm:$0x1]
        %v1721 = vlaneseq
        %v1722 = vshrl.u32 %v1721, 7
        %v1723 = vsub.s32 0, %v1722
        %v1724 = vrot.slane %v1719, %v1723
        %vm1726 = vcmask 523264
        %v1728 = vsel %vm1726, %v1710, 0
        %1730 = vmatprep.subr.mxu0 0.0
        %1731 = vmatpush1.msra.mxu0 0.0
        %1732 = vmatprep.subr.mxu0 0.0
        %1733 = vmatpush1.msra.mxu0 0.0
        %1734 = vmatprep.subr.mxu0 0.0
        %1735 = vmatpush1.msra.mxu0 0.0
        %1736 = vmatprep.subr.mxu0 0.0
        %1737 = vmatpush1.msra.mxu0 0.0
        %1738 = vmatprep.subr.mxu0 0.0
        %1739 = vmatpush1.msra.mxu0 0.0
        %1740 = vmatprep.subr.mxu0 0.0
        %1741 = vmatpush1.msra.mxu0 0.0
        %1742 = vmatprep.subr.mxu0 0.0
        %1743 = vmatpush1.msra.mxu0 0.0
        %1744 = vmatprep.subr.mxu0 0.0
        %1745 = vmatpush1.msra.mxu0 0.0
        %1746 = vmatprep.subr.mxu0 0.0
        %1747 = vmatpush1.msra.mxu0 %v1718
        %1748 = vmatprep.subr.mxu0 0.0
        %1749 = vmatpush1.msra.mxu0 %v1717
        %1750 = vmatprep.subr.mxu0 0.0
        %1751 = vmatpush1.msra.mxu0 %v1716
        %1752 = vmatprep.subr.mxu0 0.0
        %1753 = vmatpush1.msra.mxu0 %v1715
        %1754 = vmatprep.subr.mxu0 0.0
        %1755 = vmatpush1.msra.mxu0 %v1714
        %1756 = vmatprep.subr.mxu0 0.0
        %1757 = vmatpush1.msra.mxu0 %v1713
        %1758 = vmatprep.subr.mxu0 0.0
        %1759 = vmatpush1.msra.mxu0 %v1712
        %1760 = vmatprep.subr.mxu0 0.0
        %1761 = vmatpush1.msra.mxu0 %v1711
        %1762 = vmatprep.subr.mxu0 0.0
        %1763 = vmatpush2.msra.mxu0 0.0
        %1764 = vmatprep.subr.mxu0 0.0
        %1765 = vmatpush2.msra.mxu0 0.0
        %1766 = vmatprep.subr.mxu0 0.0
        %1767 = vmatpush2.msra.mxu0 0.0
        %1768 = vmatprep.subr.mxu0 0.0
        %1769 = vmatpush2.msra.mxu0 0.0
        %1770 = vmatprep.subr.mxu0 0.0
        %1771 = vmatpush2.msra.mxu0 0.0
        %1772 = vmatprep.subr.mxu0 0.0
        %1773 = vmatpush2.msra.mxu0 0.0
        %1774 = vmatprep.subr.mxu0 0.0
        %1775 = vmatpush2.msra.mxu0 0.0
        %1776 = vmatprep.subr.mxu0 0.0
        %1777 = vmatpush2.msra.mxu0 0.0
        %1778 = vmatprep.subr.mxu0 0.0
        %1779 = vmatpush2.msra.mxu0 0.0
        %1780 = vmatprep.subr.mxu0 0.0
        %1781 = vmatpush2.msra.mxu0 0.0
        %1782 = vmatprep.subr.mxu0 0.0
        %1783 = vmatpush2.msra.mxu0 0.0
        %1784 = vmatprep.subr.mxu0 0.0
        %1785 = vmatpush2.msra.mxu0 0.0
        %1786 = vmatprep.subr.mxu0 0.0
        %1787 = vmatpush2.msra.mxu0 0.0
        %1788 = vmatprep.subr.mxu0 0.0
        %1789 = vmatpush2.msra.mxu0 0.0
        %1790 = vmatprep.subr.mxu0 0.0
        %1791 = vmatpush2.msra.mxu0 0.0
        %1792 = vmatprep.subr.mxu0 0.0
        %1793 = vmatpush2.msra.mxu0 0.0
        %1794 = vmatprep.mubr.f32.mxu0 0.0
        %1795 = vmatmul.mubr.f32.gmra.mxu0 %v1728
        %v1796 = vpop.f32.mrf.mxu0
        %v1797 = vadd.f32 %v1724, %v1796
        %v1798 = vpop.f32.mrf.mxu0
        %1799 = vdwg.mxu0
        %v1800 = vadd.f32 %v1625, %v1797
        %v1801 = vld [vmem:[%s721] sm:$0x1]
        %v1802 = vld [vmem:[%s724] sm:$0x1]
        %v1803 = vsel %vm760, %v1800, 0.0
        %1804 = vadd.xlane.f32.xlu0 %v1803
        %v1805 = vpop.xlane.xlu0 %1804
        %v1806 = vmul.f32 %v1805, %v1601
        %v1807 = vsub.f32 %v1800, %v1806
        %v1808 = vmul.f32 %v1807, %v1807
        %v1809 = vsel %vm760, %v1808, 0.0
        %1810 = vadd.xlane.f32.xlu0 %v1809
        %v1811 = vpop.xlane.xlu0 %1810
        %v1812 = vmul.f32 %v1811, %v1601
        %v1813 = vadd.f32 %v1812, 1e-05
        %v1814 = vrsqrt.pop %v1813
        %v1815 = vmul.f32 %v1807, %v1814
        %v1817 = vlaneseq
        %v1818 = vshrl.u32 %v1817, 7
        %v1819 = vsub.s32 0, %v1818
        %v1820 = vrot.slane %v1801, %v1819
        %v1822 = vmul.f32 %v1815, %v1820
        %v1824 = vlaneseq
        %v1825 = vshrl.u32 %v1824, 7
        %v1826 = vsub.s32 0, %v1825
        %v1827 = vrot.slane %v1802, %v1826
        %v1829 = vadd.f32 %v1822, %v1827
        %1830 = vst.msk [vmem:[#allocation2] sm:$0xff] %vm760, %v1829
        %p1831 = scmp.eq.s32.totalorder %s38, 1
        // Predicated region
        $region97: #{tpu_custom_call.1} parent=79 // pred_check
          %p1832 = pneg %p1831
        $region98: #{tpu_custom_call.1} parent=79 // pred_check_branch
          %1834 = sbr.rel (%p1832) target = $region100
        $region99: #{tpu_custom_call.1} parent=79 // pred_region
          %v1835 = vld [vmem:[%s598] sm:$0xff]
          %v1836 = vld [vmem:[#allocation6] sm:$0xff]
          %v1837 = vld [vmem:[#allocation6 + $0x8] sm:$0xff]
          %v1838 = vld [vmem:[#allocation6 + $0x10] sm:$0xff]
          %v1839 = vld [vmem:[#allocation6 + $0x18] sm:$0xff]
          %v1840 = vld [vmem:[#allocation8] sm:$0x1]
          %v1842 = vlaneseq
          %v1843 = vshrl.u32 %v1842, 7
          %v1844 = vsub.s32 0, %v1843
          %v1845 = vrot.slane %v1840, %v1844
          %v1848 = vsel %vm760, %v1835, 0
          %1850 = vmatprep.subr.mxu0 0.0
          %1851 = vmatpush1.msra.mxu0 0.0
          %1852 = vmatprep.subr.mxu0 0.0
          %1853 = vmatpush1.msra.mxu0 0.0
          %1854 = vmatprep.subr.mxu0 0.0
          %1855 = vmatpush1.msra.mxu0 0.0
          %1856 = vmatprep.subr.mxu0 0.0
          %1857 = vmatpush1.msra.mxu0 0.0
          %1858 = vmatprep.subr.mxu0 0.0
          %1859 = vmatpush1.msra.mxu0 0.0
          %1860 = vmatprep.subr.mxu0 0.0
          %1861 = vmatpush1.msra.mxu0 0.0
          %1862 = vmatprep.subr.mxu0 0.0
          %1863 = vmatpush1.msra.mxu0 0.0
          %1864 = vmatprep.subr.mxu0 0.0
          %1865 = vmatpush1.msra.mxu0 0.0
          %1866 = vmatprep.subr.mxu0 0.0
          %1867 = vmatpush1.msra.mxu0 0.0
          %1868 = vmatprep.subr.mxu0 0.0
          %1869 = vmatpush1.msra.mxu0 0.0
          %1870 = vmatprep.subr.mxu0 0.0
          %1871 = vmatpush1.msra.mxu0 0.0
          %1872 = vmatprep.subr.mxu0 0.0
          %1873 = vmatpush1.msra.mxu0 0.0
          %1874 = vmatprep.subr.mxu0 0.0
          %1875 = vmatpush1.msra.mxu0 %v1839
          %1876 = vmatprep.subr.mxu0 0.0
          %1877 = vmatpush1.msra.mxu0 %v1838
          %1878 = vmatprep.subr.mxu0 0.0
          %1879 = vmatpush1.msra.mxu0 %v1837
          %1880 = vmatprep.subr.mxu0 0.0
          %1881 = vmatpush1.msra.mxu0 %v1836
          %1882 = vmatprep.subr.mxu0 0.0
          %1883 = vmatpush2.msra.mxu0 0.0
          %1884 = vmatprep.subr.mxu0 0.0
          %1885 = vmatpush2.msra.mxu0 0.0
          %1886 = vmatprep.subr.mxu0 0.0
          %1887 = vmatpush2.msra.mxu0 0.0
          %1888 = vmatprep.subr.mxu0 0.0
          %1889 = vmatpush2.msra.mxu0 0.0
          %1890 = vmatprep.subr.mxu0 0.0
          %1891 = vmatpush2.msra.mxu0 0.0
          %1892 = vmatprep.subr.mxu0 0.0
          %1893 = vmatpush2.msra.mxu0 0.0
          %1894 = vmatprep.subr.mxu0 0.0
          %1895 = vmatpush2.msra.mxu0 0.0
          %1896 = vmatprep.subr.mxu0 0.0
          %1897 = vmatpush2.msra.mxu0 0.0
          %1898 = vmatprep.subr.mxu0 0.0
          %1899 = vmatpush2.msra.mxu0 0.0
          %1900 = vmatprep.subr.mxu0 0.0
          %1901 = vmatpush2.msra.mxu0 0.0
          %1902 = vmatprep.subr.mxu0 0.0
          %1903 = vmatpush2.msra.mxu0 0.0
          %1904 = vmatprep.subr.mxu0 0.0
          %1905 = vmatpush2.msra.mxu0 0.0
          %1906 = vmatprep.subr.mxu0 0.0
          %1907 = vmatpush2.msra.mxu0 0.0
          %1908 = vmatprep.subr.mxu0 0.0
          %1909 = vmatpush2.msra.mxu0 0.0
          %1910 = vmatprep.subr.mxu0 0.0
          %1911 = vmatpush2.msra.mxu0 0.0
          %1912 = vmatprep.subr.mxu0 0.0
          %1913 = vmatpush2.msra.mxu0 0.0
          %1914 = vmatprep.mubr.f32.mxu0 0.0
          %1915 = vmatmul.mubr.f32.gmra.mxu0 %v1848
          %v1916 = vpop.f32.mrf.mxu0
          %v1917 = vadd.f32 %v1845, %v1916
          %v1918 = vpop.f32.mrf.mxu0
          %1919 = vdwg.mxu0
          %v1920 = vadd.f32 %v1829, %v1917
          %v1921 = vmax.f32 %v1920, 0.0
          %1922 = vst.msk [vmem:[%s696] sm:$0xff] %vm760, %v1921
        $region100: #{tpu_custom_call.1} parent=79 // pred_fallthru
          _
        %s1923 = sand.u32 %s433, 1
        %s1924 = scalar_lea.sflag [#allocation5], %s1923
        %s1925 = sand.u32 %s433, 1
        %s1926 = smul.addr %s1925, 8
        %s1927 = scalar_lea.vmem [#allocation9], %s1926
        // Predicated region
        $region101: #{tpu_custom_call.1} parent=79 // pred_check
          %p1928 = pneg %p443
        $region102: #{tpu_custom_call.1} parent=79 // pred_check_branch
          %1930 = sbr.rel (%p1928) target = $region104
        $region103: #{tpu_custom_call.1} parent=79 // pred_region
          %s1932 = ssub.s32 128, 128
          %1933 = vsyncadd %s1924, %s1932
          %s1934 = smul.addr %s37, 128
          %s1935 = scalar_lea.hbm %s15, %s1934
          %s1937 = sshll.u32 %s1927, 4
          %s1938 = int_to_ptr.vmem [resolvable:$true] %s1937
          %1940 = dma.vmem_to_hbm [thread:$0]  %s1938, 128, %s1935, %s1924
        $region104: #{tpu_custom_call.1} parent=79 // pred_fallthru
          _
      $region80: #{tpu_custom_call.1} parent=5 // pred_fallthru
        _
      %p1941 = scmp.le.s32.totalorder 2, %s28
      // Predicated region
      $region105: #{tpu_custom_call.1} parent=5 // pred_check
        %p1942 = pneg %p1941
      $region106: #{tpu_custom_call.1} parent=5 // pred_check_branch
        %1944 = sbr.rel (%p1942) target = $region108
      $region107: #{tpu_custom_call.1} parent=5 // pred_region
        %s1945 = ssub.s32 %s28, 2
        // Predicated region
        $region109: #{tpu_custom_call.1} parent=107 // pred_check
          %p1946 = pneg %p449
        $region110: #{tpu_custom_call.1} parent=107 // pred_check_branch
          %1948 = sbr.rel (%p1946) target = $region112
        $region111: #{tpu_custom_call.1} parent=107 // pred_region
          %s1949 = sand.u32 %s434, 1
          %s1950 = scalar_lea.sflag [#allocation5], %s1949
          %s1951 = sand.u32 %s434, 1
          %s1952 = smul.addr %s1951, 8
          %s1953 = scalar_lea.vmem [#allocation9], %s1952
          %1954 = dma.done %s1950, 128
        $region112: #{tpu_custom_call.1} parent=107 // pred_fallthru
          _
      $region108: #{tpu_custom_call.1} parent=5 // pred_fallthru
        _
    $region6: #{tpu_custom_call.1} parent=1 // loop_footer
      %s32 = sadd.s32 1, %s28
    $region7: #{tpu_custom_call.1} parent=1 // loop_footer_branch
      %27 = sbr.rel target = $region3
    $region8: #{tpu_custom_call.1} parent=1 // loop_exit
      _
    %1955 = vsyncpa [#allocation4], 1
    %s1956 = scalar_lea.sflag [#allocation4], 1
    %1957 = vsyncpa %s1956, 1
    %1958 = vsyncpa [#allocation7], 1
    %1959 = vsyncpa [#allocation5], 1
    %s1960 = scalar_lea.sflag [#allocation5], 1
    %1961 = vsyncpa %s1960, 1

</llo_original>
